<compile_context>
chip_gen: v7x
topology: tpu7x:2x2x1
jax: 0.10.0
libtpu: 0.0.40
codegen_flags: <defaults>
</compile_context>

<pallas_src>
import jax
import jax.numpy as jnp
from jax import lax
from jax.experimental import pallas as pl
from jax.experimental.pallas import tpu as pltpu


# ----------------------------- model sizes -----------------------------------
VOCAB = 50
VOCAB_PAD = 64          # vocab padded to a sublane-friendly size for the MXU
EMB_DIM = 32            # embedding_dim
HIDDEN_LSTM = (32, 32)  # hidden_lstm
TAGSET = 2
B, T, W = 2, 8, 3       # batch, seq len, window size

H1 = HIDDEN_LSTM[0]
H2 = HIDDEN_LSTM[1]
H1D = H1 // 2           # per-direction hidden size, layer 1
H2D = H2 // 2           # per-direction hidden size, layer 2

# --------------------------- weight-slab layout (rows, 8-aligned) -------------
OFF_WIH1 = 0            # (EMB_DIM, 128)
OFF_WHH1 = 32           # (2*H1D,  128)
OFF_B1 = 64             # (1, 128) in an 8-row padded block
OFF_WIH2 = 72           # (H1, 128)
OFF_WHH2 = 104          # (2*H2D, 128)
OFF_B2 = 136            # (1, 128)
OFF_WTAG = 144          # (H2, 128) first TAGSET lanes valid
OFF_BTAG = 176          # (1, 128)
SLAB_ROWS = 184


# -------------------- fused bidirectional LSTM layer (in-kernel) --------------
def _bilstm_layer(x_tm, wih, whh, bias, fwd_mask, gx_buf, hd, Tn, Bn):
    """One bidirectional LSTM layer, both directions fused into one recurrence.

    x_tm    : (Tn*Bn, Din) time-major input (traced value)
    wih     : (Din, 8*hd)  fused input weights (gate layout i,f,o,g ; fwd|rev lanes)
    whh     : (2*hd, 8*hd) block-diagonal recurrent weights
    bias    : (1, 8*hd)    pre-summed b_ih + b_hh, fused layout
    fwd_mask: (Tn*Bn, 8*hd) bool, True on fwd lanes of every gate block
    gx_buf  : VMEM scratch (Tn*Bn, 8*hd) — staged, pre-selected input projection
    returns : list of Tn traced (Bn, 2*hd) hidden states (one per recurrence step)
    """
    G = 2 * hd

    # Hoisted input projection for both directions / all steps: one wide matmul.
    gx = jnp.dot(x_tm, wih, preferred_element_type=jnp.float32) + bias
    # Hoisted fwd/rev time-select: rev lanes read time-reversed blocks.
    gx_rev = jnp.concatenate(
        [gx[(Tn - 1 - t) * Bn:(Tn - t) * Bn] for t in range(Tn)], axis=0)
    gx_buf[...] = jnp.where(fwd_mask, gx, gx_rev)   # staged once in VMEM (vld per step)

    h = jnp.zeros((Bn, G), jnp.float32)             # [h_f | h_r]
    c = jnp.zeros((Bn, G), jnp.float32)             # [c_f | c_r]
    h_steps = []
    for step in range(Tn):                          # fully unrolled (T static)
        gates = jnp.dot(h, whh, preferred_element_type=jnp.float32) \
            + gx_buf[step * Bn:(step + 1) * Bn, :]
        sig = jax.nn.sigmoid(gates[:, :3 * G])      # i|f|o in one 96-lane EUP call
        c = sig[:, G:2 * G] * c + sig[:, 0:G] * jnp.tanh(gates[:, 3 * G:4 * G])
        h = sig[:, 2 * G:3 * G] * jnp.tanh(c)
        h_steps.append(h)                           # stays vreg-resident
    return h_steps


# ------------------------------ Pallas kernel ---------------------------------
def transducer_kernel(sent_ref, emb_ref, w_ref, out_ref, gx1_buf, gx2_buf):
    # ---- fused embedding gather + window sum: one-hot counts @ table ---------
    sent = sent_ref[...]                                           # (B*T, W) int32
    vocab_iota = lax.broadcasted_iota(jnp.int32, (B * T, VOCAB_PAD), 1)
    counts = (sent[:, 0:1] == vocab_iota).astype(jnp.float32)
    for w in range(1, W):
        counts = counts + (sent[:, w:w + 1] == vocab_iota).astype(jnp.float32)
    x_bm = jnp.dot(counts, emb_ref[...],
                   preferred_element_type=jnp.float32)             # (B*T, E), batch-major
    # batch-major (b*T+t) -> time-major (t*B+b), once, off the recurrence chain
    x_tm = jnp.concatenate(
        [x_bm[b * T + t: b * T + t + 1] for t in range(T) for b in range(B)], axis=0)

    # ---- lane masks, built once and shared by both layers (H1D == H2D) -------
    lane = lax.broadcasted_iota(jnp.int32, (T * B, 8 * H1D), 1)
    fwd_mask = (lane % (2 * H1D)) < H1D                            # (T*B, 128)
    sel_lane = lax.broadcasted_iota(jnp.int32, (B, 2 * H1D), 1)
    sel_mask = sel_lane < H1D                                      # (B, 32)

    # ---- single weight slab, static 8-row-aligned slices ----------------------
    wih1 = w_ref[OFF_WIH1:OFF_WIH1 + EMB_DIM, :]
    whh1 = w_ref[OFF_WHH1:OFF_WHH1 + 2 * H1D, :]
    b1 = w_ref[OFF_B1:OFF_B1 + 1, :]
    wih2 = w_ref[OFF_WIH2:OFF_WIH2 + H1, :]
    whh2 = w_ref[OFF_WHH2:OFF_WHH2 + 2 * H2D, :]
    b2 = w_ref[OFF_B2:OFF_B2 + 1, :]
    wtag = w_ref[OFF_WTAG:OFF_WTAG + H2, :]                        # lanes 0:TAGSET valid
    btag = w_ref[OFF_BTAG:OFF_BTAG + 1, :]

    # ---- layer 1 ---------------------------------------------------------------
    h1_steps = _bilstm_layer(x_tm, wih1, whh1, b1, fwd_mask, gx1_buf, H1D, T, B)
    # time-major output: per time t, fwd lanes from step t, rev lanes from step
    # T-1-t — a pure VPU select (no lane movement), then one sublane concat.
    h1_tm = jnp.concatenate(
        [jnp.where(sel_mask, h1_steps[t], h1_steps[T - 1 - t]) for t in range(T)],
        axis=0)

    # ---- layer 2 ---------------------------------------------------------------
    h2_steps = _bilstm_layer(h1_tm, wih2, whh2, b2, fwd_mask, gx2_buf, H2D, T, B)
    h2_time = [jnp.where(sel_mask, h2_steps[t], h2_steps[T - 1 - t]) for t in range(T)]
    # assemble directly in PyTorch batch-major row order (b*T + t): no wrapper transpose
    h2_bm = jnp.concatenate(
        [h2_time[t][b:b + 1, :] for b in range(B) for t in range(T)], axis=0)

    # ---- hidden2tag + exact 2-class softmax (sigmoid of logit difference) -----
    logits = jnp.dot(h2_bm, wtag, preferred_element_type=jnp.float32) + btag  # (B*T,128)
    d = logits[:, 1:2] - logits[:, 0:1]
    p1 = jax.nn.sigmoid(d)
    out_ref[...] = jnp.concatenate([1.0 - p1, p1], axis=1)


# ------------------------------ JAX wrapper -----------------------------------
def transducer_window_forward(sentence, params):
    """sentence: int32 (B, T, W) window token ids -> softmax tag scores (B*T, TAGSET)."""
    sent_flat = sentence.reshape(B * T, W).astype(jnp.int32)   # contiguous reshape (free)
    vmem = pl.BlockSpec(memory_space=pltpu.MemorySpace.VMEM)
    return pl.pallas_call(
        transducer_kernel,
        out_shape=jax.ShapeDtypeStruct((B * T, TAGSET), jnp.float32),
        in_specs=[vmem, vmem, vmem],
        out_specs=vmem,
        scratch_shapes=[
            pltpu.VMEM((T * B, 8 * H1D), jnp.float32),   # staged gx_sel, layer 1
            pltpu.VMEM((T * B, 8 * H2D), jnp.float32),   # staged gx_sel, layer 2
        ],
        cost_estimate=pl.CostEstimate(
            flops=720_000, transcendentals=5_200, bytes_accessed=103_000),
    )(sent_flat, params["embedding"], params["slab"])


# --------------------- weight packing (fused gate layout) ---------------------
_GATE_IDX = {"i": 0, "f": 1, "g": 2, "o": 3}   # PyTorch row-block order
_KERNEL_GATES = ("i", "f", "o", "g")           # sigmoid gates first, tanh last


def _gate_block(x, gate, hd):
    k = _GATE_IDX[gate]
    return x[k * hd:(k + 1) * hd]


def pack_wih(w_f, w_r, hd):
    # PyTorch (4*hd, din) -> (din, 8*hd) fused columns [i_f,i_r,f_f,f_r,o_f,o_r,g_f,g_r]
    cols = []
    for g in _KERNEL_GATES:
        cols.append(_gate_block(w_f, g, hd).T)
        cols.append(_gate_block(w_r, g, hd).T)
    return jnp.concatenate(cols, axis=1)


def pack_whh(w_f, w_r, hd):
    # block-diagonal: h_f only feeds fwd gate columns, h_r only rev columns.
    z = jnp.zeros((hd, hd), jnp.float32)
    top, bot = [], []
    for g in _KERNEL_GATES:
        top += [_gate_block(w_f, g, hd).T, z]
        bot += [z, _gate_block(w_r, g, hd).T]
    return jnp.concatenate(
        [jnp.concatenate(top, axis=1), jnp.concatenate(bot, axis=1)], axis=0)


def pack_bias(b_f, b_r, hd):
    cols = []
    for g in _KERNEL_GATES:
        cols.append(_gate_block(b_f, g, hd))
        cols.append(_gate_block(b_r, g, hd))
    return jnp.concatenate(cols).reshape(1, 8 * hd)


def _pad_rows(a, rows):
    return jnp.concatenate(
        [a, jnp.zeros((rows - a.shape[0], a.shape[1]), jnp.float32)], axis=0)


def _pad_lanes(a, lanes=128):
    return jnp.concatenate(
        [a, jnp.zeros((a.shape[0], lanes - a.shape[1]), jnp.float32)], axis=1)


def build_slab(wih1, whh1, b1, wih2, whh2, b2, wtag, btag):
    slab = jnp.concatenate([
        wih1,                               # rows   0- 31
        whh1,                               # rows  32- 63
        _pad_rows(b1, 8),                   # rows  64- 71
        wih2,                               # rows  72-103
        whh2,                               # rows 104-135
        _pad_rows(b2, 8),                   # rows 136-143
        _pad_lanes(wtag),                   # rows 144-175
        _pad_rows(_pad_lanes(btag), 8),     # rows 176-183
    ], axis=0)
    assert slab.shape == (SLAB_ROWS, 128)
    return slab


# --------------------------- deterministic params -----------------------------
def init_params(key):
    ks = iter(jax.random.split(key, 40))

    def uni(shape, scale):
        return jax.random.uniform(next(ks), shape, jnp.float32, -scale, scale)

    embedding = jax.random.normal(next(ks), (VOCAB, EMB_DIM), jnp.float32)
    embedding_pad = jnp.concatenate(
        [embedding, jnp.zeros((VOCAB_PAD - VOCAB, EMB_DIM), jnp.float32)], axis=0)

    def lstm_dir_raw(din, h):
        k = 1.0 / (float(h) ** 0.5)
        return (uni((4 * h, din), k),   # w_ih (PyTorch layout)
                uni((4 * h, h), k),     # w_hh
                uni((4 * h,), k),       # b_ih
                uni((4 * h,), k))       # b_hh

    # layer 1 (bidirectional)
    f1, r1 = lstm_dir_raw(EMB_DIM, H1D), lstm_dir_raw(EMB_DIM, H1D)
    wih1 = pack_wih(f1[0], r1[0], H1D)
    whh1 = pack_whh(f1[1], r1[1], H1D)
    b1 = pack_bias(f1[2] + f1[3], r1[2] + r1[3], H1D)

    # layer 2 (bidirectional)
    f2, r2 = lstm_dir_raw(H1, H2D), lstm_dir_raw(H1, H2D)
    wih2 = pack_wih(f2[0], r2[0], H2D)
    whh2 = pack_whh(f2[1], r2[1], H2D)
    b2 = pack_bias(f2[2] + f2[3], r2[2] + r2[3], H2D)

    kt = 1.0 / (float(H2) ** 0.5)
    wtag = uni((TAGSET, H2), kt).T                 # (H2, TAGSET)
    btag = uni((TAGSET,), kt).reshape(1, TAGSET)

    return {
        "embedding": embedding_pad,                # (VOCAB_PAD, EMB_DIM)
        "slab": build_slab(wih1, whh1, b1, wih2, whh2, b2, wtag, btag),
    }


# TODO(synk): the PackedSequence (batch=True) path has no clean Pallas
# equivalent; the dense batch=False forward semantics are implemented instead.

if __name__ == "__main__":
    key = jax.random.PRNGKey(0)
    k_param, k_sent = jax.random.split(key)
    params = init_params(k_param)
    sentence = jax.random.randint(k_sent, (B, T, W), 0, VOCAB, dtype=jnp.int32)

    out = transducer_window_forward(sentence, params)
    out = jax.block_until_ready(out)

    assert out.shape == (B * T, TAGSET)
    assert bool(jnp.all(jnp.isfinite(out)))
    row_sums = jnp.sum(out, axis=-1)
    assert bool(jnp.all(jnp.abs(row_sums - 1.0) < 1e-5)), "softmax rows must sum to 1"
    print("KERNEL_OK")
</pallas_src>

<mosaic_0001>
module attributes {stable_mosaic.version = 11 : i64} {
  func.func @transducer_kernel(%arg0: memref<16x3xi32, #tpu.memory_space<vmem>>, %arg1: memref<64x32xf32, #tpu.memory_space<vmem>>, %arg2: memref<184x128xf32, #tpu.memory_space<vmem>>, %arg3: memref<16x2xf32, #tpu.memory_space<vmem>>, %arg4: memref<16x128xf32, #tpu.memory_space<vmem>>, %arg5: memref<16x128xf32, #tpu.memory_space<vmem>>) attributes {dimension_semantics = [], scalar_prefetch = 0 : i64, scratch_operands = 2 : i64, tpu.core_type = #tpu.core_type<tc>} {
    %c0 = arith.constant 0 : index
    %c0_0 = arith.constant 0 : index
    %0 = vector.load %arg0[%c0, %c0_0] : memref<16x3xi32, #tpu.memory_space<vmem>>, vector<16x3xi32>
    %1 = tpu.iota {dimensions = array<i32: 1>} : vector<16x64xi32>
    %2 = vector.extract_strided_slice %0 {offsets = [0, 0], sizes = [16, 1], strides = [1, 1]} : vector<16x3xi32> to vector<16x1xi32>
    %3 = vector.broadcast %2 : vector<16x1xi32> to vector<16x64xi32>
    %4 = arith.cmpi eq, %3, %1 : vector<16x64xi32>
    %5 = arith.extui %4 : vector<16x64xi1> to vector<16x64xi32>
    %6 = arith.sitofp %5 : vector<16x64xi32> to vector<16x64xf32>
    %7 = vector.extract_strided_slice %0 {offsets = [0, 1], sizes = [16, 1], strides = [1, 1]} : vector<16x3xi32> to vector<16x1xi32>
    %8 = vector.broadcast %7 : vector<16x1xi32> to vector<16x64xi32>
    %9 = arith.cmpi eq, %8, %1 : vector<16x64xi32>
    %10 = arith.extui %9 : vector<16x64xi1> to vector<16x64xi32>
    %11 = arith.sitofp %10 : vector<16x64xi32> to vector<16x64xf32>
    %12 = arith.addf %6, %11 : vector<16x64xf32>
    %13 = vector.extract_strided_slice %0 {offsets = [0, 2], sizes = [16, 1], strides = [1, 1]} : vector<16x3xi32> to vector<16x1xi32>
    %14 = vector.broadcast %13 : vector<16x1xi32> to vector<16x64xi32>
    %15 = arith.cmpi eq, %14, %1 : vector<16x64xi32>
    %16 = arith.extui %15 : vector<16x64xi1> to vector<16x64xi32>
    %17 = arith.sitofp %16 : vector<16x64xi32> to vector<16x64xf32>
    %18 = arith.addf %12, %17 : vector<16x64xf32>
    %c0_1 = arith.constant 0 : index
    %c0_2 = arith.constant 0 : index
    %19 = vector.load %arg1[%c0_1, %c0_2] : memref<64x32xf32, #tpu.memory_space<vmem>>, vector<64x32xf32>
    %cst = arith.constant dense<0.000000e+00> : vector<16x32xf32>
    %20 = tpu.matmul %18, %19, %cst {dimension_numbers = #tpu.dot_dimension_numbers<[1], [0], [0], [1], [0, 0, 1, 1], [], []>} : vector<16x64xf32>, vector<64x32xf32>, vector<16x32xf32> -> vector<16x32xf32>
    %21 = vector.extract_strided_slice %20 {offsets = [0, 0], sizes = [1, 32], strides = [1, 1]} : vector<16x32xf32> to vector<1x32xf32>
    %22 = vector.extract_strided_slice %20 {offsets = [8, 0], sizes = [1, 32], strides = [1, 1]} : vector<16x32xf32> to vector<1x32xf32>
    %23 = vector.extract_strided_slice %20 {offsets = [1, 0], sizes = [1, 32], strides = [1, 1]} : vector<16x32xf32> to vector<1x32xf32>
    %24 = vector.extract_strided_slice %20 {offsets = [9, 0], sizes = [1, 32], strides = [1, 1]} : vector<16x32xf32> to vector<1x32xf32>
    %25 = vector.extract_strided_slice %20 {offsets = [2, 0], sizes = [1, 32], strides = [1, 1]} : vector<16x32xf32> to vector<1x32xf32>
    %26 = vector.extract_strided_slice %20 {offsets = [10, 0], sizes = [1, 32], strides = [1, 1]} : vector<16x32xf32> to vector<1x32xf32>
    %27 = vector.extract_strided_slice %20 {offsets = [3, 0], sizes = [1, 32], strides = [1, 1]} : vector<16x32xf32> to vector<1x32xf32>
    %28 = vector.extract_strided_slice %20 {offsets = [11, 0], sizes = [1, 32], strides = [1, 1]} : vector<16x32xf32> to vector<1x32xf32>
    %29 = vector.extract_strided_slice %20 {offsets = [4, 0], sizes = [1, 32], strides = [1, 1]} : vector<16x32xf32> to vector<1x32xf32>
    %30 = vector.extract_strided_slice %20 {offsets = [12, 0], sizes = [1, 32], strides = [1, 1]} : vector<16x32xf32> to vector<1x32xf32>
    %31 = vector.extract_strided_slice %20 {offsets = [5, 0], sizes = [1, 32], strides = [1, 1]} : vector<16x32xf32> to vector<1x32xf32>
    %32 = vector.extract_strided_slice %20 {offsets = [13, 0], sizes = [1, 32], strides = [1, 1]} : vector<16x32xf32> to vector<1x32xf32>
    %33 = vector.extract_strided_slice %20 {offsets = [6, 0], sizes = [1, 32], strides = [1, 1]} : vector<16x32xf32> to vector<1x32xf32>
    %34 = vector.extract_strided_slice %20 {offsets = [14, 0], sizes = [1, 32], strides = [1, 1]} : vector<16x32xf32> to vector<1x32xf32>
    %35 = vector.extract_strided_slice %20 {offsets = [7, 0], sizes = [1, 32], strides = [1, 1]} : vector<16x32xf32> to vector<1x32xf32>
    %36 = vector.extract_strided_slice %20 {offsets = [15, 0], sizes = [1, 32], strides = [1, 1]} : vector<16x32xf32> to vector<1x32xf32>
    %37 = tpu.concatenate %21, %22, %23, %24, %25, %26, %27, %28, %29, %30, %31, %32, %33, %34, %35, %36 in 0 : vector<1x32xf32>, vector<1x32xf32>, vector<1x32xf32>, vector<1x32xf32>, vector<1x32xf32>, vector<1x32xf32>, vector<1x32xf32>, vector<1x32xf32>, vector<1x32xf32>, vector<1x32xf32>, vector<1x32xf32>, vector<1x32xf32>, vector<1x32xf32>, vector<1x32xf32>, vector<1x32xf32>, vector<1x32xf32> -> vector<16x32xf32>
    %38 = tpu.iota {dimensions = array<i32: 1>} : vector<16x128xi32>
    %c32_i32 = arith.constant 32 : i32
    %c0_i32 = arith.constant 0 : i32
    %39 = arith.cmpi eq, %c32_i32, %c0_i32 : i32
    %c1_i32 = arith.constant 1 : i32
    %40 = arith.select %39, %c1_i32, %c32_i32 : i32
    %41 = vector.broadcast %40 : i32 to vector<16x128xi32>
    %42 = arith.remsi %38, %41 : vector<16x128xi32>
    %c0_i32_3 = arith.constant 0 : i32
    %43 = vector.broadcast %c0_i32_3 : i32 to vector<16x128xi32>
    %44 = arith.cmpi ne, %42, %43 : vector<16x128xi32>
    %c0_i32_4 = arith.constant 0 : i32
    %45 = vector.broadcast %c0_i32_4 : i32 to vector<16x128xi32>
    %46 = arith.cmpi slt, %42, %45 : vector<16x128xi32>
    %c0_i32_5 = arith.constant 0 : i32
    %47 = arith.cmpi slt, %40, %c0_i32_5 : i32
    %48 = vector.broadcast %47 : i1 to vector<16x128xi1>
    %49 = vector.broadcast %48 : vector<16x128xi1> to vector<16x128xi1>
    %50 = arith.xori %46, %49 : vector<16x128xi1>
    %51 = arith.andi %50, %44 : vector<16x128xi1>
    %52 = vector.broadcast %40 : i32 to vector<16x128xi32>
    %53 = arith.addi %42, %52 : vector<16x128xi32>
    %54 = arith.select %51, %53, %42 : vector<16x128xi1>, vector<16x128xi32>
    %c16_i32 = arith.constant 16 : i32
    %55 = vector.broadcast %c16_i32 : i32 to vector<16x128xi32>
    %56 = arith.cmpi slt, %54, %55 : vector<16x128xi32>
    %57 = tpu.iota {dimensions = array<i32: 1>} : vector<2x32xi32>
    %c16_i32_6 = arith.constant 16 : i32
    %58 = vector.broadcast %c16_i32_6 : i32 to vector<2x32xi32>
    %59 = arith.cmpi slt, %57, %58 : vector<2x32xi32>
    %c0_7 = arith.constant 0 : index
    %c0_8 = arith.constant 0 : index
    %60 = vector.load %arg2[%c0_7, %c0_8] : memref<184x128xf32, #tpu.memory_space<vmem>>, vector<32x128xf32>
    %c32 = arith.constant 32 : index
    %c0_9 = arith.constant 0 : index
    %61 = vector.load %arg2[%c32, %c0_9] : memref<184x128xf32, #tpu.memory_space<vmem>>, vector<32x128xf32>
    %c64 = arith.constant 64 : index
    %c0_10 = arith.constant 0 : index
    %62 = vector.load %arg2[%c64, %c0_10] : memref<184x128xf32, #tpu.memory_space<vmem>>, vector<1x128xf32>
    %c72 = arith.constant 72 : index
    %c0_11 = arith.constant 0 : index
    %63 = vector.load %arg2[%c72, %c0_11] : memref<184x128xf32, #tpu.memory_space<vmem>>, vector<32x128xf32>
    %c104 = arith.constant 104 : index
    %c0_12 = arith.constant 0 : index
    %64 = vector.load %arg2[%c104, %c0_12] : memref<184x128xf32, #tpu.memory_space<vmem>>, vector<32x128xf32>
    %c136 = arith.constant 136 : index
    %c0_13 = arith.constant 0 : index
    %65 = vector.load %arg2[%c136, %c0_13] : memref<184x128xf32, #tpu.memory_space<vmem>>, vector<1x128xf32>
    %c144 = arith.constant 144 : index
    %c0_14 = arith.constant 0 : index
    %66 = vector.load %arg2[%c144, %c0_14] : memref<184x128xf32, #tpu.memory_space<vmem>>, vector<32x128xf32>
    %c176 = arith.constant 176 : index
    %c0_15 = arith.constant 0 : index
    %67 = vector.load %arg2[%c176, %c0_15] : memref<184x128xf32, #tpu.memory_space<vmem>>, vector<1x128xf32>
    %cst_16 = arith.constant dense<0.000000e+00> : vector<16x128xf32>
    %68 = tpu.matmul %37, %60, %cst_16 {dimension_numbers = #tpu.dot_dimension_numbers<[1], [0], [0], [1], [0, 0, 1, 1], [], []>} : vector<16x32xf32>, vector<32x128xf32>, vector<16x128xf32> -> vector<16x128xf32>
    %69 = vector.broadcast %62 : vector<1x128xf32> to vector<16x128xf32>
    %70 = arith.addf %68, %69 : vector<16x128xf32>
    %71 = vector.extract_strided_slice %70 {offsets = [14, 0], sizes = [2, 128], strides = [1, 1]} : vector<16x128xf32> to vector<2x128xf32>
    %72 = vector.extract_strided_slice %70 {offsets = [12, 0], sizes = [2, 128], strides = [1, 1]} : vector<16x128xf32> to vector<2x128xf32>
    %73 = vector.extract_strided_slice %70 {offsets = [10, 0], sizes = [2, 128], strides = [1, 1]} : vector<16x128xf32> to vector<2x128xf32>
    %74 = vector.extract_strided_slice %70 {offsets = [8, 0], sizes = [2, 128], strides = [1, 1]} : vector<16x128xf32> to vector<2x128xf32>
    %75 = vector.extract_strided_slice %70 {offsets = [6, 0], sizes = [2, 128], strides = [1, 1]} : vector<16x128xf32> to vector<2x128xf32>
    %76 = vector.extract_strided_slice %70 {offsets = [4, 0], sizes = [2, 128], strides = [1, 1]} : vector<16x128xf32> to vector<2x128xf32>
    %77 = vector.extract_strided_slice %70 {offsets = [2, 0], sizes = [2, 128], strides = [1, 1]} : vector<16x128xf32> to vector<2x128xf32>
    %78 = vector.extract_strided_slice %70 {offsets = [0, 0], sizes = [2, 128], strides = [1, 1]} : vector<16x128xf32> to vector<2x128xf32>
    %79 = tpu.concatenate %71, %72, %73, %74, %75, %76, %77, %78 in 0 : vector<2x128xf32>, vector<2x128xf32>, vector<2x128xf32>, vector<2x128xf32>, vector<2x128xf32>, vector<2x128xf32>, vector<2x128xf32>, vector<2x128xf32> -> vector<16x128xf32>
    %80 = arith.select %56, %70, %79 : vector<16x128xi1>, vector<16x128xf32>
    %c0_17 = arith.constant 0 : index
    %c0_18 = arith.constant 0 : index
    %81 = vector.load %arg4[%c0_17, %c0_18] : memref<16x128xf32, #tpu.memory_space<vmem>>, vector<16x128xf32>
    tpu.vector_store %arg4[%c0_17, %c0_18], %80 {strides = array<i32>} : memref<16x128xf32, #tpu.memory_space<vmem>>, vector<16x128xf32>,
    %cst_19 = arith.constant 0.000000e+00 : f32
    %82 = vector.broadcast %cst_19 : f32 to vector<2x32xf32>
    %cst_20 = arith.constant 0.000000e+00 : f32
    %83 = vector.broadcast %cst_20 : f32 to vector<2x32xf32>
    %cst_21 = arith.constant dense<0.000000e+00> : vector<2x128xf32>
    %84 = tpu.matmul %82, %61, %cst_21 {dimension_numbers = #tpu.dot_dimension_numbers<[1], [0], [0], [1], [0, 0, 1, 1], [], []>} : vector<2x32xf32>, vector<32x128xf32>, vector<2x128xf32> -> vector<2x128xf32>
    %c0_22 = arith.constant 0 : index
    %c0_23 = arith.constant 0 : index
    %85 = vector.load %arg4[%c0_22, %c0_23] : memref<16x128xf32, #tpu.memory_space<vmem>>, vector<2x128xf32>
    %86 = arith.addf %84, %85 : vector<2x128xf32>
    %87 = vector.extract_strided_slice %86 {offsets = [0, 0], sizes = [2, 96], strides = [1, 1]} : vector<2x128xf32> to vector<2x96xf32>
    %88 = arith.negf %87 : vector<2x96xf32>
    %89 = math.exp %88 : vector<2x96xf32>
    %cst_24 = arith.constant 1.000000e+00 : f32
    %90 = vector.broadcast %cst_24 : f32 to vector<2x96xf32>
    %91 = arith.addf %90, %89 : vector<2x96xf32>
    %92 = arith.divf %90, %91 : vector<2x96xf32>
    %93 = vector.extract_strided_slice %92 {offsets = [0, 32], sizes = [2, 32], strides = [1, 1]} : vector<2x96xf32> to vector<2x32xf32>
    %94 = arith.mulf %93, %83 : vector<2x32xf32>
    %95 = vector.extract_strided_slice %92 {offsets = [0, 0], sizes = [2, 32], strides = [1, 1]} : vector<2x96xf32> to vector<2x32xf32>
    %96 = vector.extract_strided_slice %86 {offsets = [0, 96], sizes = [2, 32], strides = [1, 1]} : vector<2x128xf32> to vector<2x32xf32>
    %97 = math.tanh %96 : vector<2x32xf32>
    %98 = arith.mulf %95, %97 : vector<2x32xf32>
    %99 = arith.addf %94, %98 : vector<2x32xf32>
    %100 = vector.extract_strided_slice %92 {offsets = [0, 64], sizes = [2, 32], strides = [1, 1]} : vector<2x96xf32> to vector<2x32xf32>
    %101 = math.tanh %99 : vector<2x32xf32>
    %102 = arith.mulf %100, %101 : vector<2x32xf32>
    %cst_25 = arith.constant dense<0.000000e+00> : vector<2x128xf32>
    %103 = tpu.matmul %102, %61, %cst_25 {dimension_numbers = #tpu.dot_dimension_numbers<[1], [0], [0], [1], [0, 0, 1, 1], [], []>} : vector<2x32xf32>, vector<32x128xf32>, vector<2x128xf32> -> vector<2x128xf32>
    %c2 = arith.constant 2 : index
    %c0_26 = arith.constant 0 : index
    %104 = vector.load %arg4[%c2, %c0_26] : memref<16x128xf32, #tpu.memory_space<vmem>>, vector<2x128xf32>
    %105 = arith.addf %103, %104 : vector<2x128xf32>
    %106 = vector.extract_strided_slice %105 {offsets = [0, 0], sizes = [2, 96], strides = [1, 1]} : vector<2x128xf32> to vector<2x96xf32>
    %107 = arith.negf %106 : vector<2x96xf32>
    %108 = math.exp %107 : vector<2x96xf32>
    %cst_27 = arith.constant 1.000000e+00 : f32
    %109 = vector.broadcast %cst_27 : f32 to vector<2x96xf32>
    %110 = arith.addf %109, %108 : vector<2x96xf32>
    %111 = arith.divf %109, %110 : vector<2x96xf32>
    %112 = vector.extract_strided_slice %111 {offsets = [0, 32], sizes = [2, 32], strides = [1, 1]} : vector<2x96xf32> to vector<2x32xf32>
    %113 = arith.mulf %112, %99 : vector<2x32xf32>
    %114 = vector.extract_strided_slice %111 {offsets = [0, 0], sizes = [2, 32], strides = [1, 1]} : vector<2x96xf32> to vector<2x32xf32>
    %115 = vector.extract_strided_slice %105 {offsets = [0, 96], sizes = [2, 32], strides = [1, 1]} : vector<2x128xf32> to vector<2x32xf32>
    %116 = math.tanh %115 : vector<2x32xf32>
    %117 = arith.mulf %114, %116 : vector<2x32xf32>
    %118 = arith.addf %113, %117 : vector<2x32xf32>
    %119 = vector.extract_strided_slice %111 {offsets = [0, 64], sizes = [2, 32], strides = [1, 1]} : vector<2x96xf32> to vector<2x32xf32>
    %120 = math.tanh %118 : vector<2x32xf32>
    %121 = arith.mulf %119, %120 : vector<2x32xf32>
    %cst_28 = arith.constant dense<0.000000e+00> : vector<2x128xf32>
    %122 = tpu.matmul %121, %61, %cst_28 {dimension_numbers = #tpu.dot_dimension_numbers<[1], [0], [0], [1], [0, 0, 1, 1], [], []>} : vector<2x32xf32>, vector<32x128xf32>, vector<2x128xf32> -> vector<2x128xf32>
    %c4 = arith.constant 4 : index
    %c0_29 = arith.constant 0 : index
    %123 = vector.load %arg4[%c4, %c0_29] : memref<16x128xf32, #tpu.memory_space<vmem>>, vector<2x128xf32>
    %124 = arith.addf %122, %123 : vector<2x128xf32>
    %125 = vector.extract_strided_slice %124 {offsets = [0, 0], sizes = [2, 96], strides = [1, 1]} : vector<2x128xf32> to vector<2x96xf32>
    %126 = arith.negf %125 : vector<2x96xf32>
    %127 = math.exp %126 : vector<2x96xf32>
    %cst_30 = arith.constant 1.000000e+00 : f32
    %128 = vector.broadcast %cst_30 : f32 to vector<2x96xf32>
    %129 = arith.addf %128, %127 : vector<2x96xf32>
    %130 = arith.divf %128, %129 : vector<2x96xf32>
    %131 = vector.extract_strided_slice %130 {offsets = [0, 32], sizes = [2, 32], strides = [1, 1]} : vector<2x96xf32> to vector<2x32xf32>
    %132 = arith.mulf %131, %118 : vector<2x32xf32>
    %133 = vector.extract_strided_slice %130 {offsets = [0, 0], sizes = [2, 32], strides = [1, 1]} : vector<2x96xf32> to vector<2x32xf32>
    %134 = vector.extract_strided_slice %124 {offsets = [0, 96], sizes = [2, 32], strides = [1, 1]} : vector<2x128xf32> to vector<2x32xf32>
    %135 = math.tanh %134 : vector<2x32xf32>
    %136 = arith.mulf %133, %135 : vector<2x32xf32>
    %137 = arith.addf %132, %136 : vector<2x32xf32>
    %138 = vector.extract_strided_slice %130 {offsets = [0, 64], sizes = [2, 32], strides = [1, 1]} : vector<2x96xf32> to vector<2x32xf32>
    %139 = math.tanh %137 : vector<2x32xf32>
    %140 = arith.mulf %138, %139 : vector<2x32xf32>
    %cst_31 = arith.constant dense<0.000000e+00> : vector<2x128xf32>
    %141 = tpu.matmul %140, %61, %cst_31 {dimension_numbers = #tpu.dot_dimension_numbers<[1], [0], [0], [1], [0, 0, 1, 1], [], []>} : vector<2x32xf32>, vector<32x128xf32>, vector<2x128xf32> -> vector<2x128xf32>
    %c6 = arith.constant 6 : index
    %c0_32 = arith.constant 0 : index
    %142 = vector.load %arg4[%c6, %c0_32] : memref<16x128xf32, #tpu.memory_space<vmem>>, vector<2x128xf32>
    %143 = arith.addf %141, %142 : vector<2x128xf32>
    %144 = vector.extract_strided_slice %143 {offsets = [0, 0], sizes = [2, 96], strides = [1, 1]} : vector<2x128xf32> to vector<2x96xf32>
    %145 = arith.negf %144 : vector<2x96xf32>
    %146 = math.exp %145 : vector<2x96xf32>
    %cst_33 = arith.constant 1.000000e+00 : f32
    %147 = vector.broadcast %cst_33 : f32 to vector<2x96xf32>
    %148 = arith.addf %147, %146 : vector<2x96xf32>
    %149 = arith.divf %147, %148 : vector<2x96xf32>
    %150 = vector.extract_strided_slice %149 {offsets = [0, 32], sizes = [2, 32], strides = [1, 1]} : vector<2x96xf32> to vector<2x32xf32>
    %151 = arith.mulf %150, %137 : vector<2x32xf32>
    %152 = vector.extract_strided_slice %149 {offsets = [0, 0], sizes = [2, 32], strides = [1, 1]} : vector<2x96xf32> to vector<2x32xf32>
    %153 = vector.extract_strided_slice %143 {offsets = [0, 96], sizes = [2, 32], strides = [1, 1]} : vector<2x128xf32> to vector<2x32xf32>
    %154 = math.tanh %153 : vector<2x32xf32>
    %155 = arith.mulf %152, %154 : vector<2x32xf32>
    %156 = arith.addf %151, %155 : vector<2x32xf32>
    %157 = vector.extract_strided_slice %149 {offsets = [0, 64], sizes = [2, 32], strides = [1, 1]} : vector<2x96xf32> to vector<2x32xf32>
    %158 = math.tanh %156 : vector<2x32xf32>
    %159 = arith.mulf %157, %158 : vector<2x32xf32>
    %cst_34 = arith.constant dense<0.000000e+00> : vector<2x128xf32>
    %160 = tpu.matmul %159, %61, %cst_34 {dimension_numbers = #tpu.dot_dimension_numbers<[1], [0], [0], [1], [0, 0, 1, 1], [], []>} : vector<2x32xf32>, vector<32x128xf32>, vector<2x128xf32> -> vector<2x128xf32>
    %c8 = arith.constant 8 : index
    %c0_35 = arith.constant 0 : index
    %161 = vector.load %arg4[%c8, %c0_35] : memref<16x128xf32, #tpu.memory_space<vmem>>, vector<2x128xf32>
    %162 = arith.addf %160, %161 : vector<2x128xf32>
    %163 = vector.extract_strided_slice %162 {offsets = [0, 0], sizes = [2, 96], strides = [1, 1]} : vector<2x128xf32> to vector<2x96xf32>
    %164 = arith.negf %163 : vector<2x96xf32>
    %165 = math.exp %164 : vector<2x96xf32>
    %cst_36 = arith.constant 1.000000e+00 : f32
    %166 = vector.broadcast %cst_36 : f32 to vector<2x96xf32>
    %167 = arith.addf %166, %165 : vector<2x96xf32>
    %168 = arith.divf %166, %167 : vector<2x96xf32>
    %169 = vector.extract_strided_slice %168 {offsets = [0, 32], sizes = [2, 32], strides = [1, 1]} : vector<2x96xf32> to vector<2x32xf32>
    %170 = arith.mulf %169, %156 : vector<2x32xf32>
    %171 = vector.extract_strided_slice %168 {offsets = [0, 0], sizes = [2, 32], strides = [1, 1]} : vector<2x96xf32> to vector<2x32xf32>
    %172 = vector.extract_strided_slice %162 {offsets = [0, 96], sizes = [2, 32], strides = [1, 1]} : vector<2x128xf32> to vector<2x32xf32>
    %173 = math.tanh %172 : vector<2x32xf32>
    %174 = arith.mulf %171, %173 : vector<2x32xf32>
    %175 = arith.addf %170, %174 : vector<2x32xf32>
    %176 = vector.extract_strided_slice %168 {offsets = [0, 64], sizes = [2, 32], strides = [1, 1]} : vector<2x96xf32> to vector<2x32xf32>
    %177 = math.tanh %175 : vector<2x32xf32>
    %178 = arith.mulf %176, %177 : vector<2x32xf32>
    %cst_37 = arith.constant dense<0.000000e+00> : vector<2x128xf32>
    %179 = tpu.matmul %178, %61, %cst_37 {dimension_numbers = #tpu.dot_dimension_numbers<[1], [0], [0], [1], [0, 0, 1, 1], [], []>} : vector<2x32xf32>, vector<32x128xf32>, vector<2x128xf32> -> vector<2x128xf32>
    %c10 = arith.constant 10 : index
    %c0_38 = arith.constant 0 : index
    %180 = vector.load %arg4[%c10, %c0_38] : memref<16x128xf32, #tpu.memory_space<vmem>>, vector<2x128xf32>
    %181 = arith.addf %179, %180 : vector<2x128xf32>
    %182 = vector.extract_strided_slice %181 {offsets = [0, 0], sizes = [2, 96], strides = [1, 1]} : vector<2x128xf32> to vector<2x96xf32>
    %183 = arith.negf %182 : vector<2x96xf32>
    %184 = math.exp %183 : vector<2x96xf32>
    %cst_39 = arith.constant 1.000000e+00 : f32
    %185 = vector.broadcast %cst_39 : f32 to vector<2x96xf32>
    %186 = arith.addf %185, %184 : vector<2x96xf32>
    %187 = arith.divf %185, %186 : vector<2x96xf32>
    %188 = vector.extract_strided_slice %187 {offsets = [0, 32], sizes = [2, 32], strides = [1, 1]} : vector<2x96xf32> to vector<2x32xf32>
    %189 = arith.mulf %188, %175 : vector<2x32xf32>
    %190 = vector.extract_strided_slice %187 {offsets = [0, 0], sizes = [2, 32], strides = [1, 1]} : vector<2x96xf32> to vector<2x32xf32>
    %191 = vector.extract_strided_slice %181 {offsets = [0, 96], sizes = [2, 32], strides = [1, 1]} : vector<2x128xf32> to vector<2x32xf32>
    %192 = math.tanh %191 : vector<2x32xf32>
    %193 = arith.mulf %190, %192 : vector<2x32xf32>
    %194 = arith.addf %189, %193 : vector<2x32xf32>
    %195 = vector.extract_strided_slice %187 {offsets = [0, 64], sizes = [2, 32], strides = [1, 1]} : vector<2x96xf32> to vector<2x32xf32>
    %196 = math.tanh %194 : vector<2x32xf32>
    %197 = arith.mulf %195, %196 : vector<2x32xf32>
    %cst_40 = arith.constant dense<0.000000e+00> : vector<2x128xf32>
    %198 = tpu.matmul %197, %61, %cst_40 {dimension_numbers = #tpu.dot_dimension_numbers<[1], [0], [0], [1], [0, 0, 1, 1], [], []>} : vector<2x32xf32>, vector<32x128xf32>, vector<2x128xf32> -> vector<2x128xf32>
    %c12 = arith.constant 12 : index
    %c0_41 = arith.constant 0 : index
    %199 = vector.load %arg4[%c12, %c0_41] : memref<16x128xf32, #tpu.memory_space<vmem>>, vector<2x128xf32>
    %200 = arith.addf %198, %199 : vector<2x128xf32>
    %201 = vector.extract_strided_slice %200 {offsets = [0, 0], sizes = [2, 96], strides = [1, 1]} : vector<2x128xf32> to vector<2x96xf32>
    %202 = arith.negf %201 : vector<2x96xf32>
    %203 = math.exp %202 : vector<2x96xf32>
    %cst_42 = arith.constant 1.000000e+00 : f32
    %204 = vector.broadcast %cst_42 : f32 to vector<2x96xf32>
    %205 = arith.addf %204, %203 : vector<2x96xf32>
    %206 = arith.divf %204, %205 : vector<2x96xf32>
    %207 = vector.extract_strided_slice %206 {offsets = [0, 32], sizes = [2, 32], strides = [1, 1]} : vector<2x96xf32> to vector<2x32xf32>
    %208 = arith.mulf %207, %194 : vector<2x32xf32>
    %209 = vector.extract_strided_slice %206 {offsets = [0, 0], sizes = [2, 32], strides = [1, 1]} : vector<2x96xf32> to vector<2x32xf32>
    %210 = vector.extract_strided_slice %200 {offsets = [0, 96], sizes = [2, 32], strides = [1, 1]} : vector<2x128xf32> to vector<2x32xf32>
    %211 = math.tanh %210 : vector<2x32xf32>
    %212 = arith.mulf %209, %211 : vector<2x32xf32>
    %213 = arith.addf %208, %212 : vector<2x32xf32>
    %214 = vector.extract_strided_slice %206 {offsets = [0, 64], sizes = [2, 32], strides = [1, 1]} : vector<2x96xf32> to vector<2x32xf32>
    %215 = math.tanh %213 : vector<2x32xf32>
    %216 = arith.mulf %214, %215 : vector<2x32xf32>
    %cst_43 = arith.constant dense<0.000000e+00> : vector<2x128xf32>
    %217 = tpu.matmul %216, %61, %cst_43 {dimension_numbers = #tpu.dot_dimension_numbers<[1], [0], [0], [1], [0, 0, 1, 1], [], []>} : vector<2x32xf32>, vector<32x128xf32>, vector<2x128xf32> -> vector<2x128xf32>
    %c14 = arith.constant 14 : index
    %c0_44 = arith.constant 0 : index
    %218 = vector.load %arg4[%c14, %c0_44] : memref<16x128xf32, #tpu.memory_space<vmem>>, vector<2x128xf32>
    %219 = arith.addf %217, %218 : vector<2x128xf32>
    %220 = vector.extract_strided_slice %219 {offsets = [0, 0], sizes = [2, 96], strides = [1, 1]} : vector<2x128xf32> to vector<2x96xf32>
    %221 = arith.negf %220 : vector<2x96xf32>
    %222 = math.exp %221 : vector<2x96xf32>
    %cst_45 = arith.constant 1.000000e+00 : f32
    %223 = vector.broadcast %cst_45 : f32 to vector<2x96xf32>
    %224 = arith.addf %223, %222 : vector<2x96xf32>
    %225 = arith.divf %223, %224 : vector<2x96xf32>
    %226 = vector.extract_strided_slice %225 {offsets = [0, 32], sizes = [2, 32], strides = [1, 1]} : vector<2x96xf32> to vector<2x32xf32>
    %227 = arith.mulf %226, %213 : vector<2x32xf32>
    %228 = vector.extract_strided_slice %225 {offsets = [0, 0], sizes = [2, 32], strides = [1, 1]} : vector<2x96xf32> to vector<2x32xf32>
    %229 = vector.extract_strided_slice %219 {offsets = [0, 96], sizes = [2, 32], strides = [1, 1]} : vector<2x128xf32> to vector<2x32xf32>
    %230 = math.tanh %229 : vector<2x32xf32>
    %231 = arith.mulf %228, %230 : vector<2x32xf32>
    %232 = arith.addf %227, %231 : vector<2x32xf32>
    %233 = vector.extract_strided_slice %225 {offsets = [0, 64], sizes = [2, 32], strides = [1, 1]} : vector<2x96xf32> to vector<2x32xf32>
    %234 = math.tanh %232 : vector<2x32xf32>
    %235 = arith.mulf %233, %234 : vector<2x32xf32>
    %236 = arith.select %59, %102, %235 : vector<2x32xi1>, vector<2x32xf32>
    %237 = arith.select %59, %121, %216 : vector<2x32xi1>, vector<2x32xf32>
    %238 = arith.select %59, %140, %197 : vector<2x32xi1>, vector<2x32xf32>
    %239 = arith.select %59, %159, %178 : vector<2x32xi1>, vector<2x32xf32>
    %240 = arith.select %59, %178, %159 : vector<2x32xi1>, vector<2x32xf32>
    %241 = arith.select %59, %197, %140 : vector<2x32xi1>, vector<2x32xf32>
    %242 = arith.select %59, %216, %121 : vector<2x32xi1>, vector<2x32xf32>
    %243 = arith.select %59, %235, %102 : vector<2x32xi1>, vector<2x32xf32>
    %244 = tpu.concatenate %236, %237, %238, %239, %240, %241, %242, %243 in 0 : vector<2x32xf32>, vector<2x32xf32>, vector<2x32xf32>, vector<2x32xf32>, vector<2x32xf32>, vector<2x32xf32>, vector<2x32xf32>, vector<2x32xf32> -> vector<16x32xf32>
    %cst_46 = arith.constant dense<0.000000e+00> : vector<16x128xf32>
    %245 = tpu.matmul %244, %63, %cst_46 {dimension_numbers = #tpu.dot_dimension_numbers<[1], [0], [0], [1], [0, 0, 1, 1], [], []>} : vector<16x32xf32>, vector<32x128xf32>, vector<16x128xf32> -> vector<16x128xf32>
    %246 = vector.broadcast %65 : vector<1x128xf32> to vector<16x128xf32>
    %247 = arith.addf %245, %246 : vector<16x128xf32>
    %248 = vector.extract_strided_slice %247 {offsets = [14, 0], sizes = [2, 128], strides = [1, 1]} : vector<16x128xf32> to vector<2x128xf32>
    %249 = vector.extract_strided_slice %247 {offsets = [12, 0], sizes = [2, 128], strides = [1, 1]} : vector<16x128xf32> to vector<2x128xf32>
    %250 = vector.extract_strided_slice %247 {offsets = [10, 0], sizes = [2, 128], strides = [1, 1]} : vector<16x128xf32> to vector<2x128xf32>
    %251 = vector.extract_strided_slice %247 {offsets = [8, 0], sizes = [2, 128], strides = [1, 1]} : vector<16x128xf32> to vector<2x128xf32>
    %252 = vector.extract_strided_slice %247 {offsets = [6, 0], sizes = [2, 128], strides = [1, 1]} : vector<16x128xf32> to vector<2x128xf32>
    %253 = vector.extract_strided_slice %247 {offsets = [4, 0], sizes = [2, 128], strides = [1, 1]} : vector<16x128xf32> to vector<2x128xf32>
    %254 = vector.extract_strided_slice %247 {offsets = [2, 0], sizes = [2, 128], strides = [1, 1]} : vector<16x128xf32> to vector<2x128xf32>
    %255 = vector.extract_strided_slice %247 {offsets = [0, 0], sizes = [2, 128], strides = [1, 1]} : vector<16x128xf32> to vector<2x128xf32>
    %256 = tpu.concatenate %248, %249, %250, %251, %252, %253, %254, %255 in 0 : vector<2x128xf32>, vector<2x128xf32>, vector<2x128xf32>, vector<2x128xf32>, vector<2x128xf32>, vector<2x128xf32>, vector<2x128xf32>, vector<2x128xf32> -> vector<16x128xf32>
    %257 = arith.select %56, %247, %256 : vector<16x128xi1>, vector<16x128xf32>
    %c0_47 = arith.constant 0 : index
    %c0_48 = arith.constant 0 : index
    %258 = vector.load %arg5[%c0_47, %c0_48] : memref<16x128xf32, #tpu.memory_space<vmem>>, vector<16x128xf32>
    tpu.vector_store %arg5[%c0_47, %c0_48], %257 {strides = array<i32>} : memref<16x128xf32, #tpu.memory_space<vmem>>, vector<16x128xf32>,
    %cst_49 = arith.constant 0.000000e+00 : f32
    %259 = vector.broadcast %cst_49 : f32 to vector<2x32xf32>
    %cst_50 = arith.constant 0.000000e+00 : f32
    %260 = vector.broadcast %cst_50 : f32 to vector<2x32xf32>
    %cst_51 = arith.constant dense<0.000000e+00> : vector<2x128xf32>
    %261 = tpu.matmul %259, %64, %cst_51 {dimension_numbers = #tpu.dot_dimension_numbers<[1], [0], [0], [1], [0, 0, 1, 1], [], []>} : vector<2x32xf32>, vector<32x128xf32>, vector<2x128xf32> -> vector<2x128xf32>
    %c0_52 = arith.constant 0 : index
    %c0_53 = arith.constant 0 : index
    %262 = vector.load %arg5[%c0_52, %c0_53] : memref<16x128xf32, #tpu.memory_space<vmem>>, vector<2x128xf32>
    %263 = arith.addf %261, %262 : vector<2x128xf32>
    %264 = vector.extract_strided_slice %263 {offsets = [0, 0], sizes = [2, 96], strides = [1, 1]} : vector<2x128xf32> to vector<2x96xf32>
    %265 = arith.negf %264 : vector<2x96xf32>
    %266 = math.exp %265 : vector<2x96xf32>
    %cst_54 = arith.constant 1.000000e+00 : f32
    %267 = vector.broadcast %cst_54 : f32 to vector<2x96xf32>
    %268 = arith.addf %267, %266 : vector<2x96xf32>
    %269 = arith.divf %267, %268 : vector<2x96xf32>
    %270 = vector.extract_strided_slice %269 {offsets = [0, 32], sizes = [2, 32], strides = [1, 1]} : vector<2x96xf32> to vector<2x32xf32>
    %271 = arith.mulf %270, %260 : vector<2x32xf32>
    %272 = vector.extract_strided_slice %269 {offsets = [0, 0], sizes = [2, 32], strides = [1, 1]} : vector<2x96xf32> to vector<2x32xf32>
    %273 = vector.extract_strided_slice %263 {offsets = [0, 96], sizes = [2, 32], strides = [1, 1]} : vector<2x128xf32> to vector<2x32xf32>
    %274 = math.tanh %273 : vector<2x32xf32>
    %275 = arith.mulf %272, %274 : vector<2x32xf32>
    %276 = arith.addf %271, %275 : vector<2x32xf32>
    %277 = vector.extract_strided_slice %269 {offsets = [0, 64], sizes = [2, 32], strides = [1, 1]} : vector<2x96xf32> to vector<2x32xf32>
    %278 = math.tanh %276 : vector<2x32xf32>
    %279 = arith.mulf %277, %278 : vector<2x32xf32>
    %cst_55 = arith.constant dense<0.000000e+00> : vector<2x128xf32>
    %280 = tpu.matmul %279, %64, %cst_55 {dimension_numbers = #tpu.dot_dimension_numbers<[1], [0], [0], [1], [0, 0, 1, 1], [], []>} : vector<2x32xf32>, vector<32x128xf32>, vector<2x128xf32> -> vector<2x128xf32>
    %c2_56 = arith.constant 2 : index
    %c0_57 = arith.constant 0 : index
    %281 = vector.load %arg5[%c2_56, %c0_57] : memref<16x128xf32, #tpu.memory_space<vmem>>, vector<2x128xf32>
    %282 = arith.addf %280, %281 : vector<2x128xf32>
    %283 = vector.extract_strided_slice %282 {offsets = [0, 0], sizes = [2, 96], strides = [1, 1]} : vector<2x128xf32> to vector<2x96xf32>
    %284 = arith.negf %283 : vector<2x96xf32>
    %285 = math.exp %284 : vector<2x96xf32>
    %cst_58 = arith.constant 1.000000e+00 : f32
    %286 = vector.broadcast %cst_58 : f32 to vector<2x96xf32>
    %287 = arith.addf %286, %285 : vector<2x96xf32>
    %288 = arith.divf %286, %287 : vector<2x96xf32>
    %289 = vector.extract_strided_slice %288 {offsets = [0, 32], sizes = [2, 32], strides = [1, 1]} : vector<2x96xf32> to vector<2x32xf32>
    %290 = arith.mulf %289, %276 : vector<2x32xf32>
    %291 = vector.extract_strided_slice %288 {offsets = [0, 0], sizes = [2, 32], strides = [1, 1]} : vector<2x96xf32> to vector<2x32xf32>
    %292 = vector.extract_strided_slice %282 {offsets = [0, 96], sizes = [2, 32], strides = [1, 1]} : vector<2x128xf32> to vector<2x32xf32>
    %293 = math.tanh %292 : vector<2x32xf32>
    %294 = arith.mulf %291, %293 : vector<2x32xf32>
    %295 = arith.addf %290, %294 : vector<2x32xf32>
    %296 = vector.extract_strided_slice %288 {offsets = [0, 64], sizes = [2, 32], strides = [1, 1]} : vector<2x96xf32> to vector<2x32xf32>
    %297 = math.tanh %295 : vector<2x32xf32>
    %298 = arith.mulf %296, %297 : vector<2x32xf32>
    %cst_59 = arith.constant dense<0.000000e+00> : vector<2x128xf32>
    %299 = tpu.matmul %298, %64, %cst_59 {dimension_numbers = #tpu.dot_dimension_numbers<[1], [0], [0], [1], [0, 0, 1, 1], [], []>} : vector<2x32xf32>, vector<32x128xf32>, vector<2x128xf32> -> vector<2x128xf32>
    %c4_60 = arith.constant 4 : index
    %c0_61 = arith.constant 0 : index
    %300 = vector.load %arg5[%c4_60, %c0_61] : memref<16x128xf32, #tpu.memory_space<vmem>>, vector<2x128xf32>
    %301 = arith.addf %299, %300 : vector<2x128xf32>
    %302 = vector.extract_strided_slice %301 {offsets = [0, 0], sizes = [2, 96], strides = [1, 1]} : vector<2x128xf32> to vector<2x96xf32>
    %303 = arith.negf %302 : vector<2x96xf32>
    %304 = math.exp %303 : vector<2x96xf32>
    %cst_62 = arith.constant 1.000000e+00 : f32
    %305 = vector.broadcast %cst_62 : f32 to vector<2x96xf32>
    %306 = arith.addf %305, %304 : vector<2x96xf32>
    %307 = arith.divf %305, %306 : vector<2x96xf32>
    %308 = vector.extract_strided_slice %307 {offsets = [0, 32], sizes = [2, 32], strides = [1, 1]} : vector<2x96xf32> to vector<2x32xf32>
    %309 = arith.mulf %308, %295 : vector<2x32xf32>
    %310 = vector.extract_strided_slice %307 {offsets = [0, 0], sizes = [2, 32], strides = [1, 1]} : vector<2x96xf32> to vector<2x32xf32>
    %311 = vector.extract_strided_slice %301 {offsets = [0, 96], sizes = [2, 32], strides = [1, 1]} : vector<2x128xf32> to vector<2x32xf32>
    %312 = math.tanh %311 : vector<2x32xf32>
    %313 = arith.mulf %310, %312 : vector<2x32xf32>
    %314 = arith.addf %309, %313 : vector<2x32xf32>
    %315 = vector.extract_strided_slice %307 {offsets = [0, 64], sizes = [2, 32], strides = [1, 1]} : vector<2x96xf32> to vector<2x32xf32>
    %316 = math.tanh %314 : vector<2x32xf32>
    %317 = arith.mulf %315, %316 : vector<2x32xf32>
    %cst_63 = arith.constant dense<0.000000e+00> : vector<2x128xf32>
    %318 = tpu.matmul %317, %64, %cst_63 {dimension_numbers = #tpu.dot_dimension_numbers<[1], [0], [0], [1], [0, 0, 1, 1], [], []>} : vector<2x32xf32>, vector<32x128xf32>, vector<2x128xf32> -> vector<2x128xf32>
    %c6_64 = arith.constant 6 : index
    %c0_65 = arith.constant 0 : index
    %319 = vector.load %arg5[%c6_64, %c0_65] : memref<16x128xf32, #tpu.memory_space<vmem>>, vector<2x128xf32>
    %320 = arith.addf %318, %319 : vector<2x128xf32>
    %321 = vector.extract_strided_slice %320 {offsets = [0, 0], sizes = [2, 96], strides = [1, 1]} : vector<2x128xf32> to vector<2x96xf32>
    %322 = arith.negf %321 : vector<2x96xf32>
    %323 = math.exp %322 : vector<2x96xf32>
    %cst_66 = arith.constant 1.000000e+00 : f32
    %324 = vector.broadcast %cst_66 : f32 to vector<2x96xf32>
    %325 = arith.addf %324, %323 : vector<2x96xf32>
    %326 = arith.divf %324, %325 : vector<2x96xf32>
    %327 = vector.extract_strided_slice %326 {offsets = [0, 32], sizes = [2, 32], strides = [1, 1]} : vector<2x96xf32> to vector<2x32xf32>
    %328 = arith.mulf %327, %314 : vector<2x32xf32>
    %329 = vector.extract_strided_slice %326 {offsets = [0, 0], sizes = [2, 32], strides = [1, 1]} : vector<2x96xf32> to vector<2x32xf32>
    %330 = vector.extract_strided_slice %320 {offsets = [0, 96], sizes = [2, 32], strides = [1, 1]} : vector<2x128xf32> to vector<2x32xf32>
    %331 = math.tanh %330 : vector<2x32xf32>
    %332 = arith.mulf %329, %331 : vector<2x32xf32>
    %333 = arith.addf %328, %332 : vector<2x32xf32>
    %334 = vector.extract_strided_slice %326 {offsets = [0, 64], sizes = [2, 32], strides = [1, 1]} : vector<2x96xf32> to vector<2x32xf32>
    %335 = math.tanh %333 : vector<2x32xf32>
    %336 = arith.mulf %334, %335 : vector<2x32xf32>
    %cst_67 = arith.constant dense<0.000000e+00> : vector<2x128xf32>
    %337 = tpu.matmul %336, %64, %cst_67 {dimension_numbers = #tpu.dot_dimension_numbers<[1], [0], [0], [1], [0, 0, 1, 1], [], []>} : vector<2x32xf32>, vector<32x128xf32>, vector<2x128xf32> -> vector<2x128xf32>
    %c8_68 = arith.constant 8 : index
    %c0_69 = arith.constant 0 : index
    %338 = vector.load %arg5[%c8_68, %c0_69] : memref<16x128xf32, #tpu.memory_space<vmem>>, vector<2x128xf32>
    %339 = arith.addf %337, %338 : vector<2x128xf32>
    %340 = vector.extract_strided_slice %339 {offsets = [0, 0], sizes = [2, 96], strides = [1, 1]} : vector<2x128xf32> to vector<2x96xf32>
    %341 = arith.negf %340 : vector<2x96xf32>
    %342 = math.exp %341 : vector<2x96xf32>
    %cst_70 = arith.constant 1.000000e+00 : f32
    %343 = vector.broadcast %cst_70 : f32 to vector<2x96xf32>
    %344 = arith.addf %343, %342 : vector<2x96xf32>
    %345 = arith.divf %343, %344 : vector<2x96xf32>
    %346 = vector.extract_strided_slice %345 {offsets = [0, 32], sizes = [2, 32], strides = [1, 1]} : vector<2x96xf32> to vector<2x32xf32>
    %347 = arith.mulf %346, %333 : vector<2x32xf32>
    %348 = vector.extract_strided_slice %345 {offsets = [0, 0], sizes = [2, 32], strides = [1, 1]} : vector<2x96xf32> to vector<2x32xf32>
    %349 = vector.extract_strided_slice %339 {offsets = [0, 96], sizes = [2, 32], strides = [1, 1]} : vector<2x128xf32> to vector<2x32xf32>
    %350 = math.tanh %349 : vector<2x32xf32>
    %351 = arith.mulf %348, %350 : vector<2x32xf32>
    %352 = arith.addf %347, %351 : vector<2x32xf32>
    %353 = vector.extract_strided_slice %345 {offsets = [0, 64], sizes = [2, 32], strides = [1, 1]} : vector<2x96xf32> to vector<2x32xf32>
    %354 = math.tanh %352 : vector<2x32xf32>
    %355 = arith.mulf %353, %354 : vector<2x32xf32>
    %cst_71 = arith.constant dense<0.000000e+00> : vector<2x128xf32>
    %356 = tpu.matmul %355, %64, %cst_71 {dimension_numbers = #tpu.dot_dimension_numbers<[1], [0], [0], [1], [0, 0, 1, 1], [], []>} : vector<2x32xf32>, vector<32x128xf32>, vector<2x128xf32> -> vector<2x128xf32>
    %c10_72 = arith.constant 10 : index
    %c0_73 = arith.constant 0 : index
    %357 = vector.load %arg5[%c10_72, %c0_73] : memref<16x128xf32, #tpu.memory_space<vmem>>, vector<2x128xf32>
    %358 = arith.addf %356, %357 : vector<2x128xf32>
    %359 = vector.extract_strided_slice %358 {offsets = [0, 0], sizes = [2, 96], strides = [1, 1]} : vector<2x128xf32> to vector<2x96xf32>
    %360 = arith.negf %359 : vector<2x96xf32>
    %361 = math.exp %360 : vector<2x96xf32>
    %cst_74 = arith.constant 1.000000e+00 : f32
    %362 = vector.broadcast %cst_74 : f32 to vector<2x96xf32>
    %363 = arith.addf %362, %361 : vector<2x96xf32>
    %364 = arith.divf %362, %363 : vector<2x96xf32>
    %365 = vector.extract_strided_slice %364 {offsets = [0, 32], sizes = [2, 32], strides = [1, 1]} : vector<2x96xf32> to vector<2x32xf32>
    %366 = arith.mulf %365, %352 : vector<2x32xf32>
    %367 = vector.extract_strided_slice %364 {offsets = [0, 0], sizes = [2, 32], strides = [1, 1]} : vector<2x96xf32> to vector<2x32xf32>
    %368 = vector.extract_strided_slice %358 {offsets = [0, 96], sizes = [2, 32], strides = [1, 1]} : vector<2x128xf32> to vector<2x32xf32>
    %369 = math.tanh %368 : vector<2x32xf32>
    %370 = arith.mulf %367, %369 : vector<2x32xf32>
    %371 = arith.addf %366, %370 : vector<2x32xf32>
    %372 = vector.extract_strided_slice %364 {offsets = [0, 64], sizes = [2, 32], strides = [1, 1]} : vector<2x96xf32> to vector<2x32xf32>
    %373 = math.tanh %371 : vector<2x32xf32>
    %374 = arith.mulf %372, %373 : vector<2x32xf32>
    %cst_75 = arith.constant dense<0.000000e+00> : vector<2x128xf32>
    %375 = tpu.matmul %374, %64, %cst_75 {dimension_numbers = #tpu.dot_dimension_numbers<[1], [0], [0], [1], [0, 0, 1, 1], [], []>} : vector<2x32xf32>, vector<32x128xf32>, vector<2x128xf32> -> vector<2x128xf32>
    %c12_76 = arith.constant 12 : index
    %c0_77 = arith.constant 0 : index
    %376 = vector.load %arg5[%c12_76, %c0_77] : memref<16x128xf32, #tpu.memory_space<vmem>>, vector<2x128xf32>
    %377 = arith.addf %375, %376 : vector<2x128xf32>
    %378 = vector.extract_strided_slice %377 {offsets = [0, 0], sizes = [2, 96], strides = [1, 1]} : vector<2x128xf32> to vector<2x96xf32>
    %379 = arith.negf %378 : vector<2x96xf32>
    %380 = math.exp %379 : vector<2x96xf32>
    %cst_78 = arith.constant 1.000000e+00 : f32
    %381 = vector.broadcast %cst_78 : f32 to vector<2x96xf32>
    %382 = arith.addf %381, %380 : vector<2x96xf32>
    %383 = arith.divf %381, %382 : vector<2x96xf32>
    %384 = vector.extract_strided_slice %383 {offsets = [0, 32], sizes = [2, 32], strides = [1, 1]} : vector<2x96xf32> to vector<2x32xf32>
    %385 = arith.mulf %384, %371 : vector<2x32xf32>
    %386 = vector.extract_strided_slice %383 {offsets = [0, 0], sizes = [2, 32], strides = [1, 1]} : vector<2x96xf32> to vector<2x32xf32>
    %387 = vector.extract_strided_slice %377 {offsets = [0, 96], sizes = [2, 32], strides = [1, 1]} : vector<2x128xf32> to vector<2x32xf32>
    %388 = math.tanh %387 : vector<2x32xf32>
    %389 = arith.mulf %386, %388 : vector<2x32xf32>
    %390 = arith.addf %385, %389 : vector<2x32xf32>
    %391 = vector.extract_strided_slice %383 {offsets = [0, 64], sizes = [2, 32], strides = [1, 1]} : vector<2x96xf32> to vector<2x32xf32>
    %392 = math.tanh %390 : vector<2x32xf32>
    %393 = arith.mulf %391, %392 : vector<2x32xf32>
    %cst_79 = arith.constant dense<0.000000e+00> : vector<2x128xf32>
    %394 = tpu.matmul %393, %64, %cst_79 {dimension_numbers = #tpu.dot_dimension_numbers<[1], [0], [0], [1], [0, 0, 1, 1], [], []>} : vector<2x32xf32>, vector<32x128xf32>, vector<2x128xf32> -> vector<2x128xf32>
    %c14_80 = arith.constant 14 : index
    %c0_81 = arith.constant 0 : index
    %395 = vector.load %arg5[%c14_80, %c0_81] : memref<16x128xf32, #tpu.memory_space<vmem>>, vector<2x128xf32>
    %396 = arith.addf %394, %395 : vector<2x128xf32>
    %397 = vector.extract_strided_slice %396 {offsets = [0, 0], sizes = [2, 96], strides = [1, 1]} : vector<2x128xf32> to vector<2x96xf32>
    %398 = arith.negf %397 : vector<2x96xf32>
    %399 = math.exp %398 : vector<2x96xf32>
    %cst_82 = arith.constant 1.000000e+00 : f32
    %400 = vector.broadcast %cst_82 : f32 to vector<2x96xf32>
    %401 = arith.addf %400, %399 : vector<2x96xf32>
    %402 = arith.divf %400, %401 : vector<2x96xf32>
    %403 = vector.extract_strided_slice %402 {offsets = [0, 32], sizes = [2, 32], strides = [1, 1]} : vector<2x96xf32> to vector<2x32xf32>
    %404 = arith.mulf %403, %390 : vector<2x32xf32>
    %405 = vector.extract_strided_slice %402 {offsets = [0, 0], sizes = [2, 32], strides = [1, 1]} : vector<2x96xf32> to vector<2x32xf32>
    %406 = vector.extract_strided_slice %396 {offsets = [0, 96], sizes = [2, 32], strides = [1, 1]} : vector<2x128xf32> to vector<2x32xf32>
    %407 = math.tanh %406 : vector<2x32xf32>
    %408 = arith.mulf %405, %407 : vector<2x32xf32>
    %409 = arith.addf %404, %408 : vector<2x32xf32>
    %410 = vector.extract_strided_slice %402 {offsets = [0, 64], sizes = [2, 32], strides = [1, 1]} : vector<2x96xf32> to vector<2x32xf32>
    %411 = math.tanh %409 : vector<2x32xf32>
    %412 = arith.mulf %410, %411 : vector<2x32xf32>
    %413 = arith.select %59, %279, %412 : vector<2x32xi1>, vector<2x32xf32>
    %414 = arith.select %59, %298, %393 : vector<2x32xi1>, vector<2x32xf32>
    %415 = arith.select %59, %317, %374 : vector<2x32xi1>, vector<2x32xf32>
    %416 = arith.select %59, %336, %355 : vector<2x32xi1>, vector<2x32xf32>
    %417 = arith.select %59, %355, %336 : vector<2x32xi1>, vector<2x32xf32>
    %418 = arith.select %59, %374, %317 : vector<2x32xi1>, vector<2x32xf32>
    %419 = arith.select %59, %393, %298 : vector<2x32xi1>, vector<2x32xf32>
    %420 = arith.select %59, %412, %279 : vector<2x32xi1>, vector<2x32xf32>
    %421 = vector.extract_strided_slice %413 {offsets = [0, 0], sizes = [1, 32], strides = [1, 1]} : vector<2x32xf32> to vector<1x32xf32>
    %422 = vector.extract_strided_slice %414 {offsets = [0, 0], sizes = [1, 32], strides = [1, 1]} : vector<2x32xf32> to vector<1x32xf32>
    %423 = vector.extract_strided_slice %415 {offsets = [0, 0], sizes = [1, 32], strides = [1, 1]} : vector<2x32xf32> to vector<1x32xf32>
    %424 = vector.extract_strided_slice %416 {offsets = [0, 0], sizes = [1, 32], strides = [1, 1]} : vector<2x32xf32> to vector<1x32xf32>
    %425 = vector.extract_strided_slice %417 {offsets = [0, 0], sizes = [1, 32], strides = [1, 1]} : vector<2x32xf32> to vector<1x32xf32>
    %426 = vector.extract_strided_slice %418 {offsets = [0, 0], sizes = [1, 32], strides = [1, 1]} : vector<2x32xf32> to vector<1x32xf32>
    %427 = vector.extract_strided_slice %419 {offsets = [0, 0], sizes = [1, 32], strides = [1, 1]} : vector<2x32xf32> to vector<1x32xf32>
    %428 = vector.extract_strided_slice %420 {offsets = [0, 0], sizes = [1, 32], strides = [1, 1]} : vector<2x32xf32> to vector<1x32xf32>
    %429 = vector.extract_strided_slice %413 {offsets = [1, 0], sizes = [1, 32], strides = [1, 1]} : vector<2x32xf32> to vector<1x32xf32>
    %430 = vector.extract_strided_slice %414 {offsets = [1, 0], sizes = [1, 32], strides = [1, 1]} : vector<2x32xf32> to vector<1x32xf32>
    %431 = vector.extract_strided_slice %415 {offsets = [1, 0], sizes = [1, 32], strides = [1, 1]} : vector<2x32xf32> to vector<1x32xf32>
    %432 = vector.extract_strided_slice %416 {offsets = [1, 0], sizes = [1, 32], strides = [1, 1]} : vector<2x32xf32> to vector<1x32xf32>
    %433 = vector.extract_strided_slice %417 {offsets = [1, 0], sizes = [1, 32], strides = [1, 1]} : vector<2x32xf32> to vector<1x32xf32>
    %434 = vector.extract_strided_slice %418 {offsets = [1, 0], sizes = [1, 32], strides = [1, 1]} : vector<2x32xf32> to vector<1x32xf32>
    %435 = vector.extract_strided_slice %419 {offsets = [1, 0], sizes = [1, 32], strides = [1, 1]} : vector<2x32xf32> to vector<1x32xf32>
    %436 = vector.extract_strided_slice %420 {offsets = [1, 0], sizes = [1, 32], strides = [1, 1]} : vector<2x32xf32> to vector<1x32xf32>
    %437 = tpu.concatenate %421, %422, %423, %424, %425, %426, %427, %428, %429, %430, %431, %432, %433, %434, %435, %436 in 0 : vector<1x32xf32>, vector<1x32xf32>, vector<1x32xf32>, vector<1x32xf32>, vector<1x32xf32>, vector<1x32xf32>, vector<1x32xf32>, vector<1x32xf32>, vector<1x32xf32>, vector<1x32xf32>, vector<1x32xf32>, vector<1x32xf32>, vector<1x32xf32>, vector<1x32xf32>, vector<1x32xf32>, vector<1x32xf32> -> vector<16x32xf32>
    %cst_83 = arith.constant dense<0.000000e+00> : vector<16x128xf32>
    %438 = tpu.matmul %437, %66, %cst_83 {dimension_numbers = #tpu.dot_dimension_numbers<[1], [0], [0], [1], [0, 0, 1, 1], [], []>} : vector<16x32xf32>, vector<32x128xf32>, vector<16x128xf32> -> vector<16x128xf32>
    %439 = vector.broadcast %67 : vector<1x128xf32> to vector<16x128xf32>
    %440 = arith.addf %438, %439 : vector<16x128xf32>
    %441 = vector.extract_strided_slice %440 {offsets = [0, 1], sizes = [16, 1], strides = [1, 1]} : vector<16x128xf32> to vector<16x1xf32>
    %442 = vector.extract_strided_slice %440 {offsets = [0, 0], sizes = [16, 1], strides = [1, 1]} : vector<16x128xf32> to vector<16x1xf32>
    %443 = arith.subf %441, %442 : vector<16x1xf32>
    %444 = arith.negf %443 : vector<16x1xf32>
    %445 = math.exp %444 : vector<16x1xf32>
    %cst_84 = arith.constant 1.000000e+00 : f32
    %446 = vector.broadcast %cst_84 : f32 to vector<16x1xf32>
    %447 = arith.addf %446, %445 : vector<16x1xf32>
    %448 = arith.divf %446, %447 : vector<16x1xf32>
    %cst_85 = arith.constant 1.000000e+00 : f32
    %449 = vector.broadcast %cst_85 : f32 to vector<16x1xf32>
    %450 = arith.subf %449, %448 : vector<16x1xf32>
    %451 = tpu.concatenate %450, %448 in 1 : vector<16x1xf32>, vector<16x1xf32> -> vector<16x2xf32>
    %c0_86 = arith.constant 0 : index
    %c0_87 = arith.constant 0 : index
    %452 = vector.load %arg3[%c0_86, %c0_87] : memref<16x2xf32, #tpu.memory_space<vmem>>, vector<16x2xf32>
    tpu.vector_store %arg3[%c0_86, %c0_87], %451 {strides = array<i32>} : memref<16x2xf32, #tpu.memory_space<vmem>>, vector<16x2xf32>,
    return
  }
}

</mosaic_0001>

<llo_original>
// kernel: tpu_custom_call.1
$region0: #{tpu_custom_call.1}
  #allocation0 [shape = 'u32[]', space=smem, size = 0x4, offset = 0x4, fixed_abs, tag = 'smem constant byte address 0x4 - core index']
  #allocation1 [shape = 'u32[144,128]{1,0:T(1,128)}', space=vmem, size = 0x12000, scoped, tag = 'internal scratch']
  #allocation2 [shape = 'f32[16,128]{1,0:T(8,128)}', space=vmem, size = 0x2000, scoped, tag = 'scratch operand']
  #allocation3 [shape = 'f32[16,128]{1,0:T(8,128)}', space=vmem, size = 0x2000, scoped, tag = 'scratch operand']
  %s0 = inlined_call_operand.vmem [shape: s32[16,3], index: 0, kind: input, shape index: {}]
  %s1 = inlined_call_operand.vmem [shape: f32[64,32], index: 1, kind: input, shape index: {}]
  %s2 = inlined_call_operand.hbm [shape: f32[184,128], index: 2, kind: input, shape index: {}]
  %s3 = inlined_call_operand.vmem [shape: f32[16,2], index: 3, kind: output, shape index: {}]
  %s4 = sld [smem:[#allocation0]]
  $region26: #{tpu_custom_call.1} parent=0
    _
  %s6 = ssub.s32 1, %s4
  %s7 = scalar_select 0, %s6, %s4
  $region1: #{tpu_custom_call.1} parent=0
    #allocation4 [shape = 'u8[94208]{0}', space=vmem, size = 0x17000, scoped, tag = 'input window, operand 2, single buffered']
    #allocation5 [shape = 's32[1]{0}', space=sflag, size = 0x4, scoped, tag = 'scoped memory for tpu_custom_call.1']
    %8 = vsyncpa [#allocation5], 0
    // Predicated region
    $region2: #{tpu_custom_call.1} parent=1 // pred_check
      _
    $region3: #{tpu_custom_call.1} parent=1 // pred_check_branch
      %10 = sbr.rel (0) target = $region5
    $region4: #{tpu_custom_call.1} parent=1 // pred_region
      _
    $region5: #{tpu_custom_call.1} parent=1 // pred_fallthru
      _
    // Predicated region
    $region6: #{tpu_custom_call.1} parent=1 // pred_check
      _
    $region7: #{tpu_custom_call.1} parent=1 // pred_check_branch
      %12 = sbr.rel (0) target = $region9
    $region8: #{tpu_custom_call.1} parent=1 // pred_region
      _
    $region9: #{tpu_custom_call.1} parent=1 // pred_fallthru
      _
    // Predicated region
    $region10: #{tpu_custom_call.1} parent=1 // pred_check
      _
    $region11: #{tpu_custom_call.1} parent=1 // pred_check_branch
      %14 = sbr.rel (0) target = $region13
    $region12: #{tpu_custom_call.1} parent=1 // pred_region
      %s16 = ssub.s32 2944, 2944
      %17 = vsyncadd [#allocation5], %s16
      %s18 = sshll.u32 [#allocation4], 4
      %s19 = int_to_ptr.vmem [resolvable:$true] %s18
      %24 = dma.hbm_to_vmem [thread:$0]  %s2, 2944, %s19, [#allocation5], 128, 128, 8
    $region13: #{tpu_custom_call.1} parent=1 // pred_fallthru
      _
    // Predicated region
    $region14: #{tpu_custom_call.1} parent=1 // pred_check
      _
    $region15: #{tpu_custom_call.1} parent=1 // pred_check_branch
      %26 = sbr.rel (0) target = $region17
    $region16: #{tpu_custom_call.1} parent=1 // pred_region
      %27 = dma.done [#allocation5], 2944
    $region17: #{tpu_custom_call.1} parent=1 // pred_fallthru
      _
    %v28 = vld [vmem:[%s0] sm:$0xff]
    %v29 = vld [vmem:[%s0 + $0x8] sm:$0xff]
    %v30 = vlaneseq
    %v31 = vand.u32 %v30, 127
    %32 = vset.pattern.permute.xlu0 0
    %33 = vperm.xlu0 %32, %v28
    %v34 = vpop.permute.xlu0 %33
    %35 = vset.pattern.permute.xlu0 0
    %36 = vperm.xlu0 %35, %v29
    %v37 = vpop.permute.xlu0 %36
    %vm38 = vcmp.eq.s32.totalorder %v34, %v31
    %vm39 = vcmp.eq.s32.totalorder %v37, %v31
    %v40 = vsel %vm38, 1, 0
    %v41 = vsel %vm39, 1, 0
    %v42 = vcvt.s32.f32 %v40
    %v43 = vcvt.s32.f32 %v41
    %44 = vset.pattern.permute.xlu0 1
    %45 = vperm.xlu0 %44, %v28
    %v46 = vpop.permute.xlu0 %45
    %47 = vset.pattern.permute.xlu0 1
    %48 = vperm.xlu0 %47, %v29
    %v49 = vpop.permute.xlu0 %48
    %vm50 = vcmp.eq.s32.totalorder %v46, %v31
    %vm51 = vcmp.eq.s32.totalorder %v49, %v31
    %v52 = vsel %vm50, 1, 0
    %v53 = vsel %vm51, 1, 0
    %v54 = vcvt.s32.f32 %v52
    %v55 = vcvt.s32.f32 %v53
    %v56 = vadd.f32 %v42, %v54
    %v57 = vadd.f32 %v43, %v55
    %58 = vset.pattern.permute.xlu0 2
    %59 = vperm.xlu0 %58, %v28
    %v60 = vpop.permute.xlu0 %59
    %61 = vset.pattern.permute.xlu0 2
    %62 = vperm.xlu0 %61, %v29
    %v63 = vpop.permute.xlu0 %62
    %vm64 = vcmp.eq.s32.totalorder %v60, %v31
    %vm65 = vcmp.eq.s32.totalorder %v63, %v31
    %v66 = vsel %vm64, 1, 0
    %v67 = vsel %vm65, 1, 0
    %v68 = vcvt.s32.f32 %v66
    %v69 = vcvt.s32.f32 %v67
    %v70 = vadd.f32 %v56, %v68
    %v71 = vadd.f32 %v57, %v69
    %v72 = vld [vmem:[%s1] sm:$0xff]
    %v73 = vld [vmem:[%s1 + $0x8] sm:$0xff]
    %v74 = vld [vmem:[%s1 + $0x10] sm:$0xff]
    %v75 = vld [vmem:[%s1 + $0x18] sm:$0xff]
    %v76 = vld [vmem:[%s1 + $0x20] sm:$0xff]
    %v77 = vld [vmem:[%s1 + $0x28] sm:$0xff]
    %v78 = vld [vmem:[%s1 + $0x30] sm:$0xff]
    %v79 = vld [vmem:[%s1 + $0x38] sm:$0xff]
    %vm80 = vcmask 523264
    %v82 = vsel %vm80, %v70, 0
    %v85 = vsel %vm80, %v71, 0
    %87 = vmatprep.subr.mxu0 0.0
    %88 = vmatpush1.msra.mxu0 %v72
    %89 = vmatprep.subr.mxu0 0.0
    %90 = vmatpush1.msra.mxu0 %v73
    %91 = vmatprep.subr.mxu0 0.0
    %92 = vmatpush1.msra.mxu0 %v74
    %93 = vmatprep.subr.mxu0 0.0
    %94 = vmatpush1.msra.mxu0 %v75
    %95 = vmatprep.subr.mxu0 0.0
    %96 = vmatpush1.msra.mxu0 %v76
    %97 = vmatprep.subr.mxu0 0.0
    %98 = vmatpush1.msra.mxu0 %v77
    %99 = vmatprep.subr.mxu0 0.0
    %100 = vmatpush1.msra.mxu0 %v78
    %101 = vmatprep.subr.mxu0 0.0
    %102 = vmatpush1.msra.mxu0 %v79
    %103 = vmatprep.subr.mxu0 0.0
    %104 = vmatpush1.msra.mxu0 0.0
    %105 = vmatprep.subr.mxu0 0.0
    %106 = vmatpush1.msra.mxu0 0.0
    %107 = vmatprep.subr.mxu0 0.0
    %108 = vmatpush1.msra.mxu0 0.0
    %109 = vmatprep.subr.mxu0 0.0
    %110 = vmatpush1.msra.mxu0 0.0
    %111 = vmatprep.subr.mxu0 0.0
    %112 = vmatpush1.msra.mxu0 0.0
    %113 = vmatprep.subr.mxu0 0.0
    %114 = vmatpush1.msra.mxu0 0.0
    %115 = vmatprep.subr.mxu0 0.0
    %116 = vmatpush1.msra.mxu0 0.0
    %117 = vmatprep.subr.mxu0 0.0
    %118 = vmatpush1.msra.mxu0 0.0
    %119 = vmatprep.subr.mxu0 0.0
    %120 = vmatpush1.msra.mxu0 0.0
    %121 = vmatprep.subr.mxu0 0.0
    %122 = vmatpush1.msra.mxu0 0.0
    %123 = vmatprep.subr.mxu0 0.0
    %124 = vmatpush1.msra.mxu0 0.0
    %125 = vmatprep.subr.mxu0 0.0
    %126 = vmatpush1.msra.mxu0 0.0
    %127 = vmatprep.subr.mxu0 0.0
    %128 = vmatpush1.msra.mxu0 0.0
    %129 = vmatprep.subr.mxu0 0.0
    %130 = vmatpush1.msra.mxu0 0.0
    %131 = vmatprep.subr.mxu0 0.0
    %132 = vmatpush1.msra.mxu0 0.0
    %133 = vmatprep.subr.mxu0 0.0
    %134 = vmatpush1.msra.mxu0 0.0
    %135 = vmatprep.subr.mxu0 0.0
    %136 = vmatpush1.msra.mxu0 0.0
    %137 = vmatprep.subr.mxu0 0.0
    %138 = vmatpush1.msra.mxu0 0.0
    %139 = vmatprep.subr.mxu0 0.0
    %140 = vmatpush1.msra.mxu0 0.0
    %141 = vmatprep.subr.mxu0 0.0
    %142 = vmatpush1.msra.mxu0 0.0
    %143 = vmatprep.subr.mxu0 0.0
    %144 = vmatpush1.msra.mxu0 0.0
    %145 = vmatprep.subr.mxu0 0.0
    %146 = vmatpush1.msra.mxu0 0.0
    %147 = vmatprep.subr.mxu0 0.0
    %148 = vmatpush1.msra.mxu0 0.0
    %149 = vmatprep.subr.mxu0 0.0
    %150 = vmatpush1.msra.mxu0 0.0
    %151 = vmatprep.mubr.f32.mxu0 0.0
    %152 = vmatmul.mubr.f32.gmra.mrb[0].mxu0 %v82
    %v153 = vpop.f32.mrb[0].mxu0
    %v154 = vadd.f32 0.0, %v153
    %v155 = vpop.f32.mrb[0].mxu0
    %156 = vmatprep.mubr.f32.mxu0 0.0
    %157 = vmatmul.mubr.f32.gmra.mrb[0].mxu0 %v85
    %v158 = vpop.f32.mrb[0].mxu0
    %v159 = vadd.f32 0.0, %v158
    %v160 = vpop.f32.mrb[0].mxu0
    %161 = vdwg.mxu0
    %v163 = vrot.slane %v159, 7
    %v166 = vrot.slane %v154, 7
    %v168 = vrot.slane %v159, 6
    %v170 = vrot.slane %v154, 6
    %v172 = vrot.slane %v159, 5
    %v174 = vrot.slane %v154, 5
    %v176 = vrot.slane %v159, 4
    %v178 = vrot.slane %v154, 4
    %v180 = vrot.slane %v159, 3
    %v182 = vrot.slane %v154, 3
    %v184 = vrot.slane %v159, 2
    %v186 = vrot.slane %v154, 2
    %v188 = vrot.slane %v159, 1
    %v190 = vrot.slane %v154, 1
    %vm192 = vcmask 1040384
    %v193 = vsel %vm192, %v154, %v163
    %vm194 = vcmask 1041408
    %v195 = vsel %vm194, %v193, %v166
    %vm196 = vcmask 1042432
    %v197 = vsel %vm196, %v195, %v168
    %vm198 = vcmask 1043456
    %v199 = vsel %vm198, %v197, %v170
    %vm200 = vcmask 1044480
    %v201 = vsel %vm200, %v199, %v172
    %vm202 = vcmask 1045504
    %v203 = vsel %vm202, %v201, %v174
    %vm204 = vcmask 1046528
    %v205 = vsel %vm204, %v203, %v176
    %v206 = vsel %vm192, %v178, %v180
    %v207 = vsel %vm194, %v206, %v182
    %v208 = vsel %vm196, %v207, %v184
    %v209 = vsel %vm198, %v208, %v186
    %v210 = vsel %vm200, %v209, %v188
    %v211 = vsel %vm202, %v210, %v190
    %v212 = vsel %vm204, %v211, %v159
    %vm213 = vcmp.lt.s32.totalorder %v31, 0
    %v214 = vsub.s32 0, %v31
    %v215 = vsel %vm213, %v214, %v31
    %v216 = vshrl.u32 %v215, 5
    %v217 = vand.u32 %v215, 31
    %v218 = vsub.s32 0, %v217
    %v219 = vsel %vm213, %v218, %v217
    %vm220 = vcmp.ne.s32.totalorder %v219, 0
    %vm221 = vcmp.lt.s32.totalorder %v219, 0
    %vm222 = vmand %vm221, %vm220
    %v223 = vadd.s32 %v219, 32
    %v224 = vsel %vm222, %v223, %v219
    %vm225 = vcmp.lt.s32.totalorder %v224, 16
    %vm226 = vcmp.lt.s32.totalorder %v31, 16
    %v227 = vld [vmem:[#allocation4] sm:$0xff]
    %v228 = vld [vmem:[#allocation4 + $0x8] sm:$0xff]
    %v229 = vld [vmem:[#allocation4 + $0x10] sm:$0xff]
    %v230 = vld [vmem:[#allocation4 + $0x18] sm:$0xff]
    %v231 = vld [vmem:[#allocation4 + $0x20] sm:$0xff]
    %v232 = vld [vmem:[#allocation4 + $0x28] sm:$0xff]
    %v233 = vld [vmem:[#allocation4 + $0x30] sm:$0xff]
    %v234 = vld [vmem:[#allocation4 + $0x38] sm:$0xff]
    %v235 = vld [vmem:[#allocation4 + $0x40] sm:$0x1]
    %v236 = vld [vmem:[#allocation4 + $0x48] sm:$0xff]
    %v237 = vld [vmem:[#allocation4 + $0x50] sm:$0xff]
    %v238 = vld [vmem:[#allocation4 + $0x58] sm:$0xff]
    %v239 = vld [vmem:[#allocation4 + $0x60] sm:$0xff]
    %v240 = vld [vmem:[#allocation4 + $0x68] sm:$0xff]
    %v241 = vld [vmem:[#allocation4 + $0x70] sm:$0xff]
    %v242 = vld [vmem:[#allocation4 + $0x78] sm:$0xff]
    %v243 = vld [vmem:[#allocation4 + $0x80] sm:$0xff]
    %v244 = vld [vmem:[#allocation4 + $0x88] sm:$0x1]
    %v245 = vld [vmem:[#allocation4 + $0x90] sm:$0xff]
    %v246 = vld [vmem:[#allocation4 + $0x98] sm:$0xff]
    %v247 = vld [vmem:[#allocation4 + $0xa0] sm:$0xff]
    %v248 = vld [vmem:[#allocation4 + $0xa8] sm:$0xff]
    %v249 = vld [vmem:[#allocation4 + $0xb0] sm:$0x1]
    %v250 = vlaneseq
    %v251 = vshrl.u32 %v250, 7
    %v252 = vsub.s32 0, %v251
    %v253 = vrot.slane %v235, %v252
    %vm254 = vcmask 261120
    %v256 = vsel %vm254, %v205, 0
    %v259 = vsel %vm254, %v212, 0
    %261 = vmatprep.subr.mxu0 0.0
    %262 = vmatpush1.msra.mxu0 %v227
    %263 = vmatprep.subr.mxu0 0.0
    %264 = vmatpush1.msra.mxu0 %v228
    %265 = vmatprep.subr.mxu0 0.0
    %266 = vmatpush1.msra.mxu0 %v229
    %267 = vmatprep.subr.mxu0 0.0
    %268 = vmatpush1.msra.mxu0 %v230
    %269 = vmatprep.subr.mxu0 0.0
    %270 = vmatpush1.msra.mxu0 0.0
    %271 = vmatprep.subr.mxu0 0.0
    %272 = vmatpush1.msra.mxu0 0.0
    %273 = vmatprep.subr.mxu0 0.0
    %274 = vmatpush1.msra.mxu0 0.0
    %275 = vmatprep.subr.mxu0 0.0
    %276 = vmatpush1.msra.mxu0 0.0
    %277 = vmatprep.subr.mxu0 0.0
    %278 = vmatpush1.msra.mxu0 0.0
    %279 = vmatprep.subr.mxu0 0.0
    %280 = vmatpush1.msra.mxu0 0.0
    %281 = vmatprep.subr.mxu0 0.0
    %282 = vmatpush1.msra.mxu0 0.0
    %283 = vmatprep.subr.mxu0 0.0
    %284 = vmatpush1.msra.mxu0 0.0
    %285 = vmatprep.subr.mxu0 0.0
    %286 = vmatpush1.msra.mxu0 0.0
    %287 = vmatprep.subr.mxu0 0.0
    %288 = vmatpush1.msra.mxu0 0.0
    %289 = vmatprep.subr.mxu0 0.0
    %290 = vmatpush1.msra.mxu0 0.0
    %291 = vmatprep.subr.mxu0 0.0
    %292 = vmatpush1.msra.mxu0 0.0
    %293 = vmatprep.subr.mxu0 0.0
    %294 = vmatpush1.msra.mxu0 0.0
    %295 = vmatprep.subr.mxu0 0.0
    %296 = vmatpush1.msra.mxu0 0.0
    %297 = vmatprep.subr.mxu0 0.0
    %298 = vmatpush1.msra.mxu0 0.0
    %299 = vmatprep.subr.mxu0 0.0
    %300 = vmatpush1.msra.mxu0 0.0
    %301 = vmatprep.subr.mxu0 0.0
    %302 = vmatpush1.msra.mxu0 0.0
    %303 = vmatprep.subr.mxu0 0.0
    %304 = vmatpush1.msra.mxu0 0.0
    %305 = vmatprep.subr.mxu0 0.0
    %306 = vmatpush1.msra.mxu0 0.0
    %307 = vmatprep.subr.mxu0 0.0
    %308 = vmatpush1.msra.mxu0 0.0
    %309 = vmatprep.subr.mxu0 0.0
    %310 = vmatpush1.msra.mxu0 0.0
    %311 = vmatprep.subr.mxu0 0.0
    %312 = vmatpush1.msra.mxu0 0.0
    %313 = vmatprep.subr.mxu0 0.0
    %314 = vmatpush1.msra.mxu0 0.0
    %315 = vmatprep.subr.mxu0 0.0
    %316 = vmatpush1.msra.mxu0 0.0
    %317 = vmatprep.subr.mxu0 0.0
    %318 = vmatpush1.msra.mxu0 0.0
    %319 = vmatprep.subr.mxu0 0.0
    %320 = vmatpush1.msra.mxu0 0.0
    %321 = vmatprep.subr.mxu0 0.0
    %322 = vmatpush1.msra.mxu0 0.0
    %323 = vmatprep.subr.mxu0 0.0
    %324 = vmatpush1.msra.mxu0 0.0
    %325 = vmatprep.mubr.f32.mxu0 0.0
    %326 = vmatmul.mubr.f32.gmra.mrb[0].mxu0 %v256
    %v327 = vpop.f32.mrb[0].mxu0
    %v328 = vadd.f32 %v253, %v327
    %v329 = vpop.f32.mrb[0].mxu0
    %330 = vmatprep.mubr.f32.mxu0 0.0
    %331 = vmatmul.mubr.f32.gmra.mrb[0].mxu0 %v259
    %v332 = vpop.f32.mrb[0].mxu0
    %v333 = vadd.f32 %v253, %v332
    %v334 = vpop.f32.mrb[0].mxu0
    %335 = vdwg.mxu0
    %v337 = vrot.slane %v333, 6
    %v339 = vrot.slane %v333, 2
    %v342 = vrot.slane %v328, 6
    %v344 = vrot.slane %v328, 2
    %v346 = vsel %vm194, %v337, %v339
    %v347 = vsel %vm198, %v346, %v337
    %v348 = vsel %vm202, %v347, %v339
    %v349 = vsel %vm194, %v342, %v344
    %v350 = vsel %vm198, %v349, %v342
    %v351 = vsel %vm202, %v350, %v344
    %v352 = vsel %vm225, %v328, %v348
    %v353 = vsel %vm225, %v333, %v351
    %354 = vst [vmem:[#allocation2] sm:$0xff] %v352
    %355 = vst [vmem:[#allocation2 + $0x8] sm:$0xff] %v353
    %v356 = vld [vmem:[#allocation2] sm:$0x3]
    %v358 = vsel %vm254, 0.0, 0
    %360 = vmatprep.subr.mxu0 0.0
    %361 = vmatpush1.msra.mxu0 %v231
    %362 = vmatprep.subr.mxu0 0.0
    %363 = vmatpush1.msra.mxu0 %v232
    %364 = vmatprep.subr.mxu0 0.0
    %365 = vmatpush1.msra.mxu0 %v233
    %366 = vmatprep.subr.mxu0 0.0
    %367 = vmatpush1.msra.mxu0 %v234
    %368 = vmatprep.subr.mxu0 0.0
    %369 = vmatpush1.msra.mxu0 0.0
    %370 = vmatprep.subr.mxu0 0.0
    %371 = vmatpush1.msra.mxu0 0.0
    %372 = vmatprep.subr.mxu0 0.0
    %373 = vmatpush1.msra.mxu0 0.0
    %374 = vmatprep.subr.mxu0 0.0
    %375 = vmatpush1.msra.mxu0 0.0
    %376 = vmatprep.subr.mxu0 0.0
    %377 = vmatpush1.msra.mxu0 0.0
    %378 = vmatprep.subr.mxu0 0.0
    %379 = vmatpush1.msra.mxu0 0.0
    %380 = vmatprep.subr.mxu0 0.0
    %381 = vmatpush1.msra.mxu0 0.0
    %382 = vmatprep.subr.mxu0 0.0
    %383 = vmatpush1.msra.mxu0 0.0
    %384 = vmatprep.subr.mxu0 0.0
    %385 = vmatpush1.msra.mxu0 0.0
    %386 = vmatprep.subr.mxu0 0.0
    %387 = vmatpush1.msra.mxu0 0.0
    %388 = vmatprep.subr.mxu0 0.0
    %389 = vmatpush1.msra.mxu0 0.0
    %390 = vmatprep.subr.mxu0 0.0
    %391 = vmatpush1.msra.mxu0 0.0
    %392 = vmatprep.subr.mxu0 0.0
    %393 = vmatpush1.msra.mxu0 0.0
    %394 = vmatprep.subr.mxu0 0.0
    %395 = vmatpush1.msra.mxu0 0.0
    %396 = vmatprep.subr.mxu0 0.0
    %397 = vmatpush1.msra.mxu0 0.0
    %398 = vmatprep.subr.mxu0 0.0
    %399 = vmatpush1.msra.mxu0 0.0
    %400 = vmatprep.subr.mxu0 0.0
    %401 = vmatpush1.msra.mxu0 0.0
    %402 = vmatprep.subr.mxu0 0.0
    %403 = vmatpush1.msra.mxu0 0.0
    %404 = vmatprep.subr.mxu0 0.0
    %405 = vmatpush1.msra.mxu0 0.0
    %406 = vmatprep.subr.mxu0 0.0
    %407 = vmatpush1.msra.mxu0 0.0
    %408 = vmatprep.subr.mxu0 0.0
    %409 = vmatpush1.msra.mxu0 0.0
    %410 = vmatprep.subr.mxu0 0.0
    %411 = vmatpush1.msra.mxu0 0.0
    %412 = vmatprep.subr.mxu0 0.0
    %413 = vmatpush1.msra.mxu0 0.0
    %414 = vmatprep.subr.mxu0 0.0
    %415 = vmatpush1.msra.mxu0 0.0
    %416 = vmatprep.subr.mxu0 0.0
    %417 = vmatpush1.msra.mxu0 0.0
    %418 = vmatprep.subr.mxu0 0.0
    %419 = vmatpush1.msra.mxu0 0.0
    %420 = vmatprep.subr.mxu0 0.0
    %421 = vmatpush1.msra.mxu0 0.0
    %422 = vmatprep.subr.mxu0 0.0
    %423 = vmatpush1.msra.mxu0 0.0
    %424 = vmatprep.mubr.f32.mxu0 0.0
    %425 = vmatmul.mubr.f32.gmra.mrb[0].mxu0 %v358
    %v426 = vpop.f32.mrb[0].mxu0
    %v427 = vadd.f32 %v356, %v426
    %v428 = vpop.f32.mrb[0].mxu0
    %429 = vdwg.mxu0
    %v430 = vxor.u32 %v427, 2147483648
    %v431 = vmul.f32 %v430, 1.442695
    %v432 = vpow.pop %v431
    %v433 = vadd.f32 %v432, 1.0
    %v434 = vrcp.pop %v433
    %v435 = vmul.f32 1.0, %v434
    %v436 = vmul.f32 %v435, 0.0
    %v437 = vtanh.pop %v427
    %439 = vrot.lane.b32.xlu0 %v437, 32
    %v440 = vpop.permute.xlu0 %439
    %v442 = vmul.f32 %v435, %v440
    %444 = vrot.lane.b32.xlu0 %v442, 32
    %v445 = vpop.permute.xlu0 %444
    %v447 = vadd.f32 %v436, %v445
    %v448 = vtanh.pop %v447
    %450 = vrot.lane.b32.xlu0 %v448, 32
    %v451 = vpop.permute.xlu0 %450
    %v453 = vmul.f32 %v435, %v451
    %v454 = vld [vmem:[#allocation2 + $0x2] sm:$0x3]
    %456 = vrot.lane.b32.xlu0 %v453, 64
    %v457 = vpop.permute.xlu0 %456
    %v458 = vsel %vm254, %v457, 0
    %460 = vmatprep.subr.mxu0 0.0
    %461 = vmatpush1.msra.mxu0 %v231
    %462 = vmatprep.subr.mxu0 0.0
    %463 = vmatpush1.msra.mxu0 %v232
    %464 = vmatprep.subr.mxu0 0.0
    %465 = vmatpush1.msra.mxu0 %v233
    %466 = vmatprep.subr.mxu0 0.0
    %467 = vmatpush1.msra.mxu0 %v234
    %468 = vmatprep.subr.mxu0 0.0
    %469 = vmatpush1.msra.mxu0 0.0
    %470 = vmatprep.subr.mxu0 0.0
    %471 = vmatpush1.msra.mxu0 0.0
    %472 = vmatprep.subr.mxu0 0.0
    %473 = vmatpush1.msra.mxu0 0.0
    %474 = vmatprep.subr.mxu0 0.0
    %475 = vmatpush1.msra.mxu0 0.0
    %476 = vmatprep.subr.mxu0 0.0
    %477 = vmatpush1.msra.mxu0 0.0
    %478 = vmatprep.subr.mxu0 0.0
    %479 = vmatpush1.msra.mxu0 0.0
    %480 = vmatprep.subr.mxu0 0.0
    %481 = vmatpush1.msra.mxu0 0.0
    %482 = vmatprep.subr.mxu0 0.0
    %483 = vmatpush1.msra.mxu0 0.0
    %484 = vmatprep.subr.mxu0 0.0
    %485 = vmatpush1.msra.mxu0 0.0
    %486 = vmatprep.subr.mxu0 0.0
    %487 = vmatpush1.msra.mxu0 0.0
    %488 = vmatprep.subr.mxu0 0.0
    %489 = vmatpush1.msra.mxu0 0.0
    %490 = vmatprep.subr.mxu0 0.0
    %491 = vmatpush1.msra.mxu0 0.0
    %492 = vmatprep.subr.mxu0 0.0
    %493 = vmatpush1.msra.mxu0 0.0
    %494 = vmatprep.subr.mxu0 0.0
    %495 = vmatpush1.msra.mxu0 0.0
    %496 = vmatprep.subr.mxu0 0.0
    %497 = vmatpush1.msra.mxu0 0.0
    %498 = vmatprep.subr.mxu0 0.0
    %499 = vmatpush1.msra.mxu0 0.0
    %500 = vmatprep.subr.mxu0 0.0
    %501 = vmatpush1.msra.mxu0 0.0
    %502 = vmatprep.subr.mxu0 0.0
    %503 = vmatpush1.msra.mxu0 0.0
    %504 = vmatprep.subr.mxu0 0.0
    %505 = vmatpush1.msra.mxu0 0.0
    %506 = vmatprep.subr.mxu0 0.0
    %507 = vmatpush1.msra.mxu0 0.0
    %508 = vmatprep.subr.mxu0 0.0
    %509 = vmatpush1.msra.mxu0 0.0
    %510 = vmatprep.subr.mxu0 0.0
    %511 = vmatpush1.msra.mxu0 0.0
    %512 = vmatprep.subr.mxu0 0.0
    %513 = vmatpush1.msra.mxu0 0.0
    %514 = vmatprep.subr.mxu0 0.0
    %515 = vmatpush1.msra.mxu0 0.0
    %516 = vmatprep.subr.mxu0 0.0
    %517 = vmatpush1.msra.mxu0 0.0
    %518 = vmatprep.subr.mxu0 0.0
    %519 = vmatpush1.msra.mxu0 0.0
    %520 = vmatprep.subr.mxu0 0.0
    %521 = vmatpush1.msra.mxu0 0.0
    %522 = vmatprep.subr.mxu0 0.0
    %523 = vmatpush1.msra.mxu0 0.0
    %524 = vmatprep.mubr.f32.mxu0 0.0
    %525 = vmatmul.mubr.f32.gmra.mrb[0].mxu0 %v458
    %v526 = vpop.f32.mrb[0].mxu0
    %v527 = vadd.f32 %v454, %v526
    %v528 = vpop.f32.mrb[0].mxu0
    %529 = vdwg.mxu0
    %v530 = vxor.u32 %v527, 2147483648
    %v531 = vmul.f32 %v530, 1.442695
    %v532 = vpow.pop %v531
    %v533 = vadd.f32 %v532, 1.0
    %v534 = vrcp.pop %v533
    %v535 = vmul.f32 1.0, %v534
    %v536 = vmul.f32 %v535, %v447
    %v537 = vtanh.pop %v527
    %539 = vrot.lane.b32.xlu0 %v537, 32
    %v540 = vpop.permute.xlu0 %539
    %v542 = vmul.f32 %v535, %v540
    %544 = vrot.lane.b32.xlu0 %v542, 32
    %v545 = vpop.permute.xlu0 %544
    %v547 = vadd.f32 %v536, %v545
    %v548 = vtanh.pop %v547
    %550 = vrot.lane.b32.xlu0 %v548, 32
    %v551 = vpop.permute.xlu0 %550
    %v553 = vmul.f32 %v535, %v551
    %v554 = vld [vmem:[#allocation2 + $0x4] sm:$0x3]
    %556 = vrot.lane.b32.xlu0 %v553, 64
    %v557 = vpop.permute.xlu0 %556
    %v558 = vsel %vm254, %v557, 0
    %560 = vmatprep.subr.mxu0 0.0
    %561 = vmatpush1.msra.mxu0 %v231
    %562 = vmatprep.subr.mxu0 0.0
    %563 = vmatpush1.msra.mxu0 %v232
    %564 = vmatprep.subr.mxu0 0.0
    %565 = vmatpush1.msra.mxu0 %v233
    %566 = vmatprep.subr.mxu0 0.0
    %567 = vmatpush1.msra.mxu0 %v234
    %568 = vmatprep.subr.mxu0 0.0
    %569 = vmatpush1.msra.mxu0 0.0
    %570 = vmatprep.subr.mxu0 0.0
    %571 = vmatpush1.msra.mxu0 0.0
    %572 = vmatprep.subr.mxu0 0.0
    %573 = vmatpush1.msra.mxu0 0.0
    %574 = vmatprep.subr.mxu0 0.0
    %575 = vmatpush1.msra.mxu0 0.0
    %576 = vmatprep.subr.mxu0 0.0
    %577 = vmatpush1.msra.mxu0 0.0
    %578 = vmatprep.subr.mxu0 0.0
    %579 = vmatpush1.msra.mxu0 0.0
    %580 = vmatprep.subr.mxu0 0.0
    %581 = vmatpush1.msra.mxu0 0.0
    %582 = vmatprep.subr.mxu0 0.0
    %583 = vmatpush1.msra.mxu0 0.0
    %584 = vmatprep.subr.mxu0 0.0
    %585 = vmatpush1.msra.mxu0 0.0
    %586 = vmatprep.subr.mxu0 0.0
    %587 = vmatpush1.msra.mxu0 0.0
    %588 = vmatprep.subr.mxu0 0.0
    %589 = vmatpush1.msra.mxu0 0.0
    %590 = vmatprep.subr.mxu0 0.0
    %591 = vmatpush1.msra.mxu0 0.0
    %592 = vmatprep.subr.mxu0 0.0
    %593 = vmatpush1.msra.mxu0 0.0
    %594 = vmatprep.subr.mxu0 0.0
    %595 = vmatpush1.msra.mxu0 0.0
    %596 = vmatprep.subr.mxu0 0.0
    %597 = vmatpush1.msra.mxu0 0.0
    %598 = vmatprep.subr.mxu0 0.0
    %599 = vmatpush1.msra.mxu0 0.0
    %600 = vmatprep.subr.mxu0 0.0
    %601 = vmatpush1.msra.mxu0 0.0
    %602 = vmatprep.subr.mxu0 0.0
    %603 = vmatpush1.msra.mxu0 0.0
    %604 = vmatprep.subr.mxu0 0.0
    %605 = vmatpush1.msra.mxu0 0.0
    %606 = vmatprep.subr.mxu0 0.0
    %607 = vmatpush1.msra.mxu0 0.0
    %608 = vmatprep.subr.mxu0 0.0
    %609 = vmatpush1.msra.mxu0 0.0
    %610 = vmatprep.subr.mxu0 0.0
    %611 = vmatpush1.msra.mxu0 0.0
    %612 = vmatprep.subr.mxu0 0.0
    %613 = vmatpush1.msra.mxu0 0.0
    %614 = vmatprep.subr.mxu0 0.0
    %615 = vmatpush1.msra.mxu0 0.0
    %616 = vmatprep.subr.mxu0 0.0
    %617 = vmatpush1.msra.mxu0 0.0
    %618 = vmatprep.subr.mxu0 0.0
    %619 = vmatpush1.msra.mxu0 0.0
    %620 = vmatprep.subr.mxu0 0.0
    %621 = vmatpush1.msra.mxu0 0.0
    %622 = vmatprep.subr.mxu0 0.0
    %623 = vmatpush1.msra.mxu0 0.0
    %624 = vmatprep.mubr.f32.mxu0 0.0
    %625 = vmatmul.mubr.f32.gmra.mrb[0].mxu0 %v558
    %v626 = vpop.f32.mrb[0].mxu0
    %v627 = vadd.f32 %v554, %v626
    %v628 = vpop.f32.mrb[0].mxu0
    %629 = vdwg.mxu0
    %v630 = vxor.u32 %v627, 2147483648
    %v631 = vmul.f32 %v630, 1.442695
    %v632 = vpow.pop %v631
    %v633 = vadd.f32 %v632, 1.0
    %v634 = vrcp.pop %v633
    %v635 = vmul.f32 1.0, %v634
    %v636 = vmul.f32 %v635, %v547
    %v637 = vtanh.pop %v627
    %639 = vrot.lane.b32.xlu0 %v637, 32
    %v640 = vpop.permute.xlu0 %639
    %v642 = vmul.f32 %v635, %v640
    %644 = vrot.lane.b32.xlu0 %v642, 32
    %v645 = vpop.permute.xlu0 %644
    %v647 = vadd.f32 %v636, %v645
    %v648 = vtanh.pop %v647
    %650 = vrot.lane.b32.xlu0 %v648, 32
    %v651 = vpop.permute.xlu0 %650
    %v653 = vmul.f32 %v635, %v651
    %v654 = vld [vmem:[#allocation2 + $0x6] sm:$0x3]
    %656 = vrot.lane.b32.xlu0 %v653, 64
    %v657 = vpop.permute.xlu0 %656
    %v658 = vsel %vm254, %v657, 0
    %660 = vmatprep.subr.mxu0 0.0
    %661 = vmatpush1.msra.mxu0 %v231
    %662 = vmatprep.subr.mxu0 0.0
    %663 = vmatpush1.msra.mxu0 %v232
    %664 = vmatprep.subr.mxu0 0.0
    %665 = vmatpush1.msra.mxu0 %v233
    %666 = vmatprep.subr.mxu0 0.0
    %667 = vmatpush1.msra.mxu0 %v234
    %668 = vmatprep.subr.mxu0 0.0
    %669 = vmatpush1.msra.mxu0 0.0
    %670 = vmatprep.subr.mxu0 0.0
    %671 = vmatpush1.msra.mxu0 0.0
    %672 = vmatprep.subr.mxu0 0.0
    %673 = vmatpush1.msra.mxu0 0.0
    %674 = vmatprep.subr.mxu0 0.0
    %675 = vmatpush1.msra.mxu0 0.0
    %676 = vmatprep.subr.mxu0 0.0
    %677 = vmatpush1.msra.mxu0 0.0
    %678 = vmatprep.subr.mxu0 0.0
    %679 = vmatpush1.msra.mxu0 0.0
    %680 = vmatprep.subr.mxu0 0.0
    %681 = vmatpush1.msra.mxu0 0.0
    %682 = vmatprep.subr.mxu0 0.0
    %683 = vmatpush1.msra.mxu0 0.0
    %684 = vmatprep.subr.mxu0 0.0
    %685 = vmatpush1.msra.mxu0 0.0
    %686 = vmatprep.subr.mxu0 0.0
    %687 = vmatpush1.msra.mxu0 0.0
    %688 = vmatprep.subr.mxu0 0.0
    %689 = vmatpush1.msra.mxu0 0.0
    %690 = vmatprep.subr.mxu0 0.0
    %691 = vmatpush1.msra.mxu0 0.0
    %692 = vmatprep.subr.mxu0 0.0
    %693 = vmatpush1.msra.mxu0 0.0
    %694 = vmatprep.subr.mxu0 0.0
    %695 = vmatpush1.msra.mxu0 0.0
    %696 = vmatprep.subr.mxu0 0.0
    %697 = vmatpush1.msra.mxu0 0.0
    %698 = vmatprep.subr.mxu0 0.0
    %699 = vmatpush1.msra.mxu0 0.0
    %700 = vmatprep.subr.mxu0 0.0
    %701 = vmatpush1.msra.mxu0 0.0
    %702 = vmatprep.subr.mxu0 0.0
    %703 = vmatpush1.msra.mxu0 0.0
    %704 = vmatprep.subr.mxu0 0.0
    %705 = vmatpush1.msra.mxu0 0.0
    %706 = vmatprep.subr.mxu0 0.0
    %707 = vmatpush1.msra.mxu0 0.0
    %708 = vmatprep.subr.mxu0 0.0
    %709 = vmatpush1.msra.mxu0 0.0
    %710 = vmatprep.subr.mxu0 0.0
    %711 = vmatpush1.msra.mxu0 0.0
    %712 = vmatprep.subr.mxu0 0.0
    %713 = vmatpush1.msra.mxu0 0.0
    %714 = vmatprep.subr.mxu0 0.0
    %715 = vmatpush1.msra.mxu0 0.0
    %716 = vmatprep.subr.mxu0 0.0
    %717 = vmatpush1.msra.mxu0 0.0
    %718 = vmatprep.subr.mxu0 0.0
    %719 = vmatpush1.msra.mxu0 0.0
    %720 = vmatprep.subr.mxu0 0.0
    %721 = vmatpush1.msra.mxu0 0.0
    %722 = vmatprep.subr.mxu0 0.0
    %723 = vmatpush1.msra.mxu0 0.0
    %724 = vmatprep.mubr.f32.mxu0 0.0
    %725 = vmatmul.mubr.f32.gmra.mrb[0].mxu0 %v658
    %v726 = vpop.f32.mrb[0].mxu0
    %v727 = vadd.f32 %v654, %v726
    %v728 = vpop.f32.mrb[0].mxu0
    %729 = vdwg.mxu0
    %v730 = vxor.u32 %v727, 2147483648
    %v731 = vmul.f32 %v730, 1.442695
    %v732 = vpow.pop %v731
    %v733 = vadd.f32 %v732, 1.0
    %v734 = vrcp.pop %v733
    %v735 = vmul.f32 1.0, %v734
    %v736 = vmul.f32 %v735, %v647
    %v737 = vtanh.pop %v727
    %739 = vrot.lane.b32.xlu0 %v737, 32
    %v740 = vpop.permute.xlu0 %739
    %v742 = vmul.f32 %v735, %v740
    %744 = vrot.lane.b32.xlu0 %v742, 32
    %v745 = vpop.permute.xlu0 %744
    %v747 = vadd.f32 %v736, %v745
    %v748 = vtanh.pop %v747
    %750 = vrot.lane.b32.xlu0 %v748, 32
    %v751 = vpop.permute.xlu0 %750
    %v753 = vmul.f32 %v735, %v751
    %v754 = vld [vmem:[#allocation2 + $0x8] sm:$0x3]
    %756 = vrot.lane.b32.xlu0 %v753, 64
    %v757 = vpop.permute.xlu0 %756
    %v758 = vsel %vm254, %v757, 0
    %760 = vmatprep.subr.mxu0 0.0
    %761 = vmatpush1.msra.mxu0 %v231
    %762 = vmatprep.subr.mxu0 0.0
    %763 = vmatpush1.msra.mxu0 %v232
    %764 = vmatprep.subr.mxu0 0.0
    %765 = vmatpush1.msra.mxu0 %v233
    %766 = vmatprep.subr.mxu0 0.0
    %767 = vmatpush1.msra.mxu0 %v234
    %768 = vmatprep.subr.mxu0 0.0
    %769 = vmatpush1.msra.mxu0 0.0
    %770 = vmatprep.subr.mxu0 0.0
    %771 = vmatpush1.msra.mxu0 0.0
    %772 = vmatprep.subr.mxu0 0.0
    %773 = vmatpush1.msra.mxu0 0.0
    %774 = vmatprep.subr.mxu0 0.0
    %775 = vmatpush1.msra.mxu0 0.0
    %776 = vmatprep.subr.mxu0 0.0
    %777 = vmatpush1.msra.mxu0 0.0
    %778 = vmatprep.subr.mxu0 0.0
    %779 = vmatpush1.msra.mxu0 0.0
    %780 = vmatprep.subr.mxu0 0.0
    %781 = vmatpush1.msra.mxu0 0.0
    %782 = vmatprep.subr.mxu0 0.0
    %783 = vmatpush1.msra.mxu0 0.0
    %784 = vmatprep.subr.mxu0 0.0
    %785 = vmatpush1.msra.mxu0 0.0
    %786 = vmatprep.subr.mxu0 0.0
    %787 = vmatpush1.msra.mxu0 0.0
    %788 = vmatprep.subr.mxu0 0.0
    %789 = vmatpush1.msra.mxu0 0.0
    %790 = vmatprep.subr.mxu0 0.0
    %791 = vmatpush1.msra.mxu0 0.0
    %792 = vmatprep.subr.mxu0 0.0
    %793 = vmatpush1.msra.mxu0 0.0
    %794 = vmatprep.subr.mxu0 0.0
    %795 = vmatpush1.msra.mxu0 0.0
    %796 = vmatprep.subr.mxu0 0.0
    %797 = vmatpush1.msra.mxu0 0.0
    %798 = vmatprep.subr.mxu0 0.0
    %799 = vmatpush1.msra.mxu0 0.0
    %800 = vmatprep.subr.mxu0 0.0
    %801 = vmatpush1.msra.mxu0 0.0
    %802 = vmatprep.subr.mxu0 0.0
    %803 = vmatpush1.msra.mxu0 0.0
    %804 = vmatprep.subr.mxu0 0.0
    %805 = vmatpush1.msra.mxu0 0.0
    %806 = vmatprep.subr.mxu0 0.0
    %807 = vmatpush1.msra.mxu0 0.0
    %808 = vmatprep.subr.mxu0 0.0
    %809 = vmatpush1.msra.mxu0 0.0
    %810 = vmatprep.subr.mxu0 0.0
    %811 = vmatpush1.msra.mxu0 0.0
    %812 = vmatprep.subr.mxu0 0.0
    %813 = vmatpush1.msra.mxu0 0.0
    %814 = vmatprep.subr.mxu0 0.0
    %815 = vmatpush1.msra.mxu0 0.0
    %816 = vmatprep.subr.mxu0 0.0
    %817 = vmatpush1.msra.mxu0 0.0
    %818 = vmatprep.subr.mxu0 0.0
    %819 = vmatpush1.msra.mxu0 0.0
    %820 = vmatprep.subr.mxu0 0.0
    %821 = vmatpush1.msra.mxu0 0.0
    %822 = vmatprep.subr.mxu0 0.0
    %823 = vmatpush1.msra.mxu0 0.0
    %824 = vmatprep.mubr.f32.mxu0 0.0
    %825 = vmatmul.mubr.f32.gmra.mrb[0].mxu0 %v758
    %v826 = vpop.f32.mrb[0].mxu0
    %v827 = vadd.f32 %v754, %v826
    %v828 = vpop.f32.mrb[0].mxu0
    %829 = vdwg.mxu0
    %v830 = vxor.u32 %v827, 2147483648
    %v831 = vmul.f32 %v830, 1.442695
    %v832 = vpow.pop %v831
    %v833 = vadd.f32 %v832, 1.0
    %v834 = vrcp.pop %v833
    %v835 = vmul.f32 1.0, %v834
    %v836 = vmul.f32 %v835, %v747
    %v837 = vtanh.pop %v827
    %839 = vrot.lane.b32.xlu0 %v837, 32
    %v840 = vpop.permute.xlu0 %839
    %v842 = vmul.f32 %v835, %v840
    %844 = vrot.lane.b32.xlu0 %v842, 32
    %v845 = vpop.permute.xlu0 %844
    %v847 = vadd.f32 %v836, %v845
    %v848 = vtanh.pop %v847
    %850 = vrot.lane.b32.xlu0 %v848, 32
    %v851 = vpop.permute.xlu0 %850
    %v853 = vmul.f32 %v835, %v851
    %v854 = vld [vmem:[#allocation2 + $0xa] sm:$0x3]
    %856 = vrot.lane.b32.xlu0 %v853, 64
    %v857 = vpop.permute.xlu0 %856
    %v858 = vsel %vm254, %v857, 0
    %860 = vmatprep.subr.mxu0 0.0
    %861 = vmatpush1.msra.mxu0 %v231
    %862 = vmatprep.subr.mxu0 0.0
    %863 = vmatpush1.msra.mxu0 %v232
    %864 = vmatprep.subr.mxu0 0.0
    %865 = vmatpush1.msra.mxu0 %v233
    %866 = vmatprep.subr.mxu0 0.0
    %867 = vmatpush1.msra.mxu0 %v234
    %868 = vmatprep.subr.mxu0 0.0
    %869 = vmatpush1.msra.mxu0 0.0
    %870 = vmatprep.subr.mxu0 0.0
    %871 = vmatpush1.msra.mxu0 0.0
    %872 = vmatprep.subr.mxu0 0.0
    %873 = vmatpush1.msra.mxu0 0.0
    %874 = vmatprep.subr.mxu0 0.0
    %875 = vmatpush1.msra.mxu0 0.0
    %876 = vmatprep.subr.mxu0 0.0
    %877 = vmatpush1.msra.mxu0 0.0
    %878 = vmatprep.subr.mxu0 0.0
    %879 = vmatpush1.msra.mxu0 0.0
    %880 = vmatprep.subr.mxu0 0.0
    %881 = vmatpush1.msra.mxu0 0.0
    %882 = vmatprep.subr.mxu0 0.0
    %883 = vmatpush1.msra.mxu0 0.0
    %884 = vmatprep.subr.mxu0 0.0
    %885 = vmatpush1.msra.mxu0 0.0
    %886 = vmatprep.subr.mxu0 0.0
    %887 = vmatpush1.msra.mxu0 0.0
    %888 = vmatprep.subr.mxu0 0.0
    %889 = vmatpush1.msra.mxu0 0.0
    %890 = vmatprep.subr.mxu0 0.0
    %891 = vmatpush1.msra.mxu0 0.0
    %892 = vmatprep.subr.mxu0 0.0
    %893 = vmatpush1.msra.mxu0 0.0
    %894 = vmatprep.subr.mxu0 0.0
    %895 = vmatpush1.msra.mxu0 0.0
    %896 = vmatprep.subr.mxu0 0.0
    %897 = vmatpush1.msra.mxu0 0.0
    %898 = vmatprep.subr.mxu0 0.0
    %899 = vmatpush1.msra.mxu0 0.0
    %900 = vmatprep.subr.mxu0 0.0
    %901 = vmatpush1.msra.mxu0 0.0
    %902 = vmatprep.subr.mxu0 0.0
    %903 = vmatpush1.msra.mxu0 0.0
    %904 = vmatprep.subr.mxu0 0.0
    %905 = vmatpush1.msra.mxu0 0.0
    %906 = vmatprep.subr.mxu0 0.0
    %907 = vmatpush1.msra.mxu0 0.0
    %908 = vmatprep.subr.mxu0 0.0
    %909 = vmatpush1.msra.mxu0 0.0
    %910 = vmatprep.subr.mxu0 0.0
    %911 = vmatpush1.msra.mxu0 0.0
    %912 = vmatprep.subr.mxu0 0.0
    %913 = vmatpush1.msra.mxu0 0.0
    %914 = vmatprep.subr.mxu0 0.0
    %915 = vmatpush1.msra.mxu0 0.0
    %916 = vmatprep.subr.mxu0 0.0
    %917 = vmatpush1.msra.mxu0 0.0
    %918 = vmatprep.subr.mxu0 0.0
    %919 = vmatpush1.msra.mxu0 0.0
    %920 = vmatprep.subr.mxu0 0.0
    %921 = vmatpush1.msra.mxu0 0.0
    %922 = vmatprep.subr.mxu0 0.0
    %923 = vmatpush1.msra.mxu0 0.0
    %924 = vmatprep.mubr.f32.mxu0 0.0
    %925 = vmatmul.mubr.f32.gmra.mrb[0].mxu0 %v858
    %v926 = vpop.f32.mrb[0].mxu0
    %v927 = vadd.f32 %v854, %v926
    %v928 = vpop.f32.mrb[0].mxu0
    %929 = vdwg.mxu0
    %v930 = vxor.u32 %v927, 2147483648
    %v931 = vmul.f32 %v930, 1.442695
    %v932 = vpow.pop %v931
    %v933 = vadd.f32 %v932, 1.0
    %v934 = vrcp.pop %v933
    %v935 = vmul.f32 1.0, %v934
    %v936 = vmul.f32 %v935, %v847
    %v937 = vtanh.pop %v927
    %939 = vrot.lane.b32.xlu0 %v937, 32
    %v940 = vpop.permute.xlu0 %939
    %v942 = vmul.f32 %v935, %v940
    %944 = vrot.lane.b32.xlu0 %v942, 32
    %v945 = vpop.permute.xlu0 %944
    %v947 = vadd.f32 %v936, %v945
    %v948 = vtanh.pop %v947
    %950 = vrot.lane.b32.xlu0 %v948, 32
    %v951 = vpop.permute.xlu0 %950
    %v953 = vmul.f32 %v935, %v951
    %v954 = vld [vmem:[#allocation2 + $0xc] sm:$0x3]
    %956 = vrot.lane.b32.xlu0 %v953, 64
    %v957 = vpop.permute.xlu0 %956
    %v958 = vsel %vm254, %v957, 0
    %960 = vmatprep.subr.mxu0 0.0
    %961 = vmatpush1.msra.mxu0 %v231
    %962 = vmatprep.subr.mxu0 0.0
    %963 = vmatpush1.msra.mxu0 %v232
    %964 = vmatprep.subr.mxu0 0.0
    %965 = vmatpush1.msra.mxu0 %v233
    %966 = vmatprep.subr.mxu0 0.0
    %967 = vmatpush1.msra.mxu0 %v234
    %968 = vmatprep.subr.mxu0 0.0
    %969 = vmatpush1.msra.mxu0 0.0
    %970 = vmatprep.subr.mxu0 0.0
    %971 = vmatpush1.msra.mxu0 0.0
    %972 = vmatprep.subr.mxu0 0.0
    %973 = vmatpush1.msra.mxu0 0.0
    %974 = vmatprep.subr.mxu0 0.0
    %975 = vmatpush1.msra.mxu0 0.0
    %976 = vmatprep.subr.mxu0 0.0
    %977 = vmatpush1.msra.mxu0 0.0
    %978 = vmatprep.subr.mxu0 0.0
    %979 = vmatpush1.msra.mxu0 0.0
    %980 = vmatprep.subr.mxu0 0.0
    %981 = vmatpush1.msra.mxu0 0.0
    %982 = vmatprep.subr.mxu0 0.0
    %983 = vmatpush1.msra.mxu0 0.0
    %984 = vmatprep.subr.mxu0 0.0
    %985 = vmatpush1.msra.mxu0 0.0
    %986 = vmatprep.subr.mxu0 0.0
    %987 = vmatpush1.msra.mxu0 0.0
    %988 = vmatprep.subr.mxu0 0.0
    %989 = vmatpush1.msra.mxu0 0.0
    %990 = vmatprep.subr.mxu0 0.0
    %991 = vmatpush1.msra.mxu0 0.0
    %992 = vmatprep.subr.mxu0 0.0
    %993 = vmatpush1.msra.mxu0 0.0
    %994 = vmatprep.subr.mxu0 0.0
    %995 = vmatpush1.msra.mxu0 0.0
    %996 = vmatprep.subr.mxu0 0.0
    %997 = vmatpush1.msra.mxu0 0.0
    %998 = vmatprep.subr.mxu0 0.0
    %999 = vmatpush1.msra.mxu0 0.0
    %1000 = vmatprep.subr.mxu0 0.0
    %1001 = vmatpush1.msra.mxu0 0.0
    %1002 = vmatprep.subr.mxu0 0.0
    %1003 = vmatpush1.msra.mxu0 0.0
    %1004 = vmatprep.subr.mxu0 0.0
    %1005 = vmatpush1.msra.mxu0 0.0
    %1006 = vmatprep.subr.mxu0 0.0
    %1007 = vmatpush1.msra.mxu0 0.0
    %1008 = vmatprep.subr.mxu0 0.0
    %1009 = vmatpush1.msra.mxu0 0.0
    %1010 = vmatprep.subr.mxu0 0.0
    %1011 = vmatpush1.msra.mxu0 0.0
    %1012 = vmatprep.subr.mxu0 0.0
    %1013 = vmatpush1.msra.mxu0 0.0
    %1014 = vmatprep.subr.mxu0 0.0
    %1015 = vmatpush1.msra.mxu0 0.0
    %1016 = vmatprep.subr.mxu0 0.0
    %1017 = vmatpush1.msra.mxu0 0.0
    %1018 = vmatprep.subr.mxu0 0.0
    %1019 = vmatpush1.msra.mxu0 0.0
    %1020 = vmatprep.subr.mxu0 0.0
    %1021 = vmatpush1.msra.mxu0 0.0
    %1022 = vmatprep.subr.mxu0 0.0
    %1023 = vmatpush1.msra.mxu0 0.0
    %1024 = vmatprep.mubr.f32.mxu0 0.0
    %1025 = vmatmul.mubr.f32.gmra.mrb[0].mxu0 %v958
    %v1026 = vpop.f32.mrb[0].mxu0
    %v1027 = vadd.f32 %v954, %v1026
    %v1028 = vpop.f32.mrb[0].mxu0
    %1029 = vdwg.mxu0
    %v1030 = vxor.u32 %v1027, 2147483648
    %v1031 = vmul.f32 %v1030, 1.442695
    %v1032 = vpow.pop %v1031
    %v1033 = vadd.f32 %v1032, 1.0
    %v1034 = vrcp.pop %v1033
    %v1035 = vmul.f32 1.0, %v1034
    %v1036 = vmul.f32 %v1035, %v947
    %v1037 = vtanh.pop %v1027
    %1039 = vrot.lane.b32.xlu0 %v1037, 32
    %v1040 = vpop.permute.xlu0 %1039
    %v1042 = vmul.f32 %v1035, %v1040
    %1044 = vrot.lane.b32.xlu0 %v1042, 32
    %v1045 = vpop.permute.xlu0 %1044
    %v1047 = vadd.f32 %v1036, %v1045
    %v1048 = vtanh.pop %v1047
    %1050 = vrot.lane.b32.xlu0 %v1048, 32
    %v1051 = vpop.permute.xlu0 %1050
    %v1053 = vmul.f32 %v1035, %v1051
    %v1054 = vld [vmem:[#allocation2 + $0xe] sm:$0x3]
    %1056 = vrot.lane.b32.xlu0 %v1053, 64
    %v1057 = vpop.permute.xlu0 %1056
    %v1058 = vsel %vm254, %v1057, 0
    %1060 = vmatprep.subr.mxu0 0.0
    %1061 = vmatpush1.msra.mxu0 %v231
    %1062 = vmatprep.subr.mxu0 0.0
    %1063 = vmatpush1.msra.mxu0 %v232
    %1064 = vmatprep.subr.mxu0 0.0
    %1065 = vmatpush1.msra.mxu0 %v233
    %1066 = vmatprep.subr.mxu0 0.0
    %1067 = vmatpush1.msra.mxu0 %v234
    %1068 = vmatprep.subr.mxu0 0.0
    %1069 = vmatpush1.msra.mxu0 0.0
    %1070 = vmatprep.subr.mxu0 0.0
    %1071 = vmatpush1.msra.mxu0 0.0
    %1072 = vmatprep.subr.mxu0 0.0
    %1073 = vmatpush1.msra.mxu0 0.0
    %1074 = vmatprep.subr.mxu0 0.0
    %1075 = vmatpush1.msra.mxu0 0.0
    %1076 = vmatprep.subr.mxu0 0.0
    %1077 = vmatpush1.msra.mxu0 0.0
    %1078 = vmatprep.subr.mxu0 0.0
    %1079 = vmatpush1.msra.mxu0 0.0
    %1080 = vmatprep.subr.mxu0 0.0
    %1081 = vmatpush1.msra.mxu0 0.0
    %1082 = vmatprep.subr.mxu0 0.0
    %1083 = vmatpush1.msra.mxu0 0.0
    %1084 = vmatprep.subr.mxu0 0.0
    %1085 = vmatpush1.msra.mxu0 0.0
    %1086 = vmatprep.subr.mxu0 0.0
    %1087 = vmatpush1.msra.mxu0 0.0
    %1088 = vmatprep.subr.mxu0 0.0
    %1089 = vmatpush1.msra.mxu0 0.0
    %1090 = vmatprep.subr.mxu0 0.0
    %1091 = vmatpush1.msra.mxu0 0.0
    %1092 = vmatprep.subr.mxu0 0.0
    %1093 = vmatpush1.msra.mxu0 0.0
    %1094 = vmatprep.subr.mxu0 0.0
    %1095 = vmatpush1.msra.mxu0 0.0
    %1096 = vmatprep.subr.mxu0 0.0
    %1097 = vmatpush1.msra.mxu0 0.0
    %1098 = vmatprep.subr.mxu0 0.0
    %1099 = vmatpush1.msra.mxu0 0.0
    %1100 = vmatprep.subr.mxu0 0.0
    %1101 = vmatpush1.msra.mxu0 0.0
    %1102 = vmatprep.subr.mxu0 0.0
    %1103 = vmatpush1.msra.mxu0 0.0
    %1104 = vmatprep.subr.mxu0 0.0
    %1105 = vmatpush1.msra.mxu0 0.0
    %1106 = vmatprep.subr.mxu0 0.0
    %1107 = vmatpush1.msra.mxu0 0.0
    %1108 = vmatprep.subr.mxu0 0.0
    %1109 = vmatpush1.msra.mxu0 0.0
    %1110 = vmatprep.subr.mxu0 0.0
    %1111 = vmatpush1.msra.mxu0 0.0
    %1112 = vmatprep.subr.mxu0 0.0
    %1113 = vmatpush1.msra.mxu0 0.0
    %1114 = vmatprep.subr.mxu0 0.0
    %1115 = vmatpush1.msra.mxu0 0.0
    %1116 = vmatprep.subr.mxu0 0.0
    %1117 = vmatpush1.msra.mxu0 0.0
    %1118 = vmatprep.subr.mxu0 0.0
    %1119 = vmatpush1.msra.mxu0 0.0
    %1120 = vmatprep.subr.mxu0 0.0
    %1121 = vmatpush1.msra.mxu0 0.0
    %1122 = vmatprep.subr.mxu0 0.0
    %1123 = vmatpush1.msra.mxu0 0.0
    %1124 = vmatprep.mubr.f32.mxu0 0.0
    %1125 = vmatmul.mubr.f32.gmra.mrb[0].mxu0 %v1058
    %v1126 = vpop.f32.mrb[0].mxu0
    %v1127 = vadd.f32 %v1054, %v1126
    %v1128 = vpop.f32.mrb[0].mxu0
    %1129 = vdwg.mxu0
    %v1130 = vxor.u32 %v1127, 2147483648
    %v1131 = vmul.f32 %v1130, 1.442695
    %v1132 = vpow.pop %v1131
    %v1133 = vadd.f32 %v1132, 1.0
    %v1134 = vrcp.pop %v1133
    %v1135 = vmul.f32 1.0, %v1134
    %v1136 = vmul.f32 %v1135, %v1047
    %v1137 = vtanh.pop %v1127
    %1139 = vrot.lane.b32.xlu0 %v1137, 32
    %v1140 = vpop.permute.xlu0 %1139
    %v1142 = vmul.f32 %v1135, %v1140
    %1144 = vrot.lane.b32.xlu0 %v1142, 32
    %v1145 = vpop.permute.xlu0 %1144
    %v1147 = vadd.f32 %v1136, %v1145
    %v1148 = vtanh.pop %v1147
    %1150 = vrot.lane.b32.xlu0 %v1148, 32
    %v1151 = vpop.permute.xlu0 %1150
    %v1153 = vmul.f32 %v1135, %v1151
    %1156 = vrot.lane.b32.xlu0 %v1153, 64
    %v1157 = vpop.permute.xlu0 %1156
    %v1159 = vsel %vm226, %v457, %v1157
    %v1162 = vsel %vm226, %v557, %v1057
    %v1165 = vsel %vm226, %v657, %v957
    %v1168 = vsel %vm226, %v757, %v857
    %v1169 = vsel %vm226, %v857, %v757
    %v1170 = vsel %vm226, %v957, %v657
    %v1171 = vsel %vm226, %v1057, %v557
    %v1172 = vsel %vm226, %v1157, %v457
    %v1174 = vrot.slane %v1162, 6
    %v1177 = vrot.slane %v1165, 4
    %v1180 = vrot.slane %v1168, 2
    %v1183 = vrot.slane %v1170, 6
    %v1186 = vrot.slane %v1171, 4
    %v1189 = vrot.slane %v1172, 2
    %v1191 = vsel %vm194, %v1159, %v1174
    %v1192 = vsel %vm198, %v1191, %v1177
    %v1193 = vsel %vm202, %v1192, %v1180
    %v1194 = vsel %vm194, %v1169, %v1183
    %v1195 = vsel %vm198, %v1194, %v1186
    %v1196 = vsel %vm202, %v1195, %v1189
    %v1197 = vlaneseq
    %v1198 = vshrl.u32 %v1197, 7
    %v1199 = vsub.s32 0, %v1198
    %v1200 = vrot.slane %v244, %v1199
    %v1202 = vsel %vm254, %v1193, 0
    %v1205 = vsel %vm254, %v1196, 0
    %1207 = vmatprep.subr.mxu0 0.0
    %1208 = vmatpush1.msra.mxu0 %v236
    %1209 = vmatprep.subr.mxu0 0.0
    %1210 = vmatpush1.msra.mxu0 %v237
    %1211 = vmatprep.subr.mxu0 0.0
    %1212 = vmatpush1.msra.mxu0 %v238
    %1213 = vmatprep.subr.mxu0 0.0
    %1214 = vmatpush1.msra.mxu0 %v239
    %1215 = vmatprep.subr.mxu0 0.0
    %1216 = vmatpush1.msra.mxu0 0.0
    %1217 = vmatprep.subr.mxu0 0.0
    %1218 = vmatpush1.msra.mxu0 0.0
    %1219 = vmatprep.subr.mxu0 0.0
    %1220 = vmatpush1.msra.mxu0 0.0
    %1221 = vmatprep.subr.mxu0 0.0
    %1222 = vmatpush1.msra.mxu0 0.0
    %1223 = vmatprep.subr.mxu0 0.0
    %1224 = vmatpush1.msra.mxu0 0.0
    %1225 = vmatprep.subr.mxu0 0.0
    %1226 = vmatpush1.msra.mxu0 0.0
    %1227 = vmatprep.subr.mxu0 0.0
    %1228 = vmatpush1.msra.mxu0 0.0
    %1229 = vmatprep.subr.mxu0 0.0
    %1230 = vmatpush1.msra.mxu0 0.0
    %1231 = vmatprep.subr.mxu0 0.0
    %1232 = vmatpush1.msra.mxu0 0.0
    %1233 = vmatprep.subr.mxu0 0.0
    %1234 = vmatpush1.msra.mxu0 0.0
    %1235 = vmatprep.subr.mxu0 0.0
    %1236 = vmatpush1.msra.mxu0 0.0
    %1237 = vmatprep.subr.mxu0 0.0
    %1238 = vmatpush1.msra.mxu0 0.0
    %1239 = vmatprep.subr.mxu0 0.0
    %1240 = vmatpush1.msra.mxu0 0.0
    %1241 = vmatprep.subr.mxu0 0.0
    %1242 = vmatpush1.msra.mxu0 0.0
    %1243 = vmatprep.subr.mxu0 0.0
    %1244 = vmatpush1.msra.mxu0 0.0
    %1245 = vmatprep.subr.mxu0 0.0
    %1246 = vmatpush1.msra.mxu0 0.0
    %1247 = vmatprep.subr.mxu0 0.0
    %1248 = vmatpush1.msra.mxu0 0.0
    %1249 = vmatprep.subr.mxu0 0.0
    %1250 = vmatpush1.msra.mxu0 0.0
    %1251 = vmatprep.subr.mxu0 0.0
    %1252 = vmatpush1.msra.mxu0 0.0
    %1253 = vmatprep.subr.mxu0 0.0
    %1254 = vmatpush1.msra.mxu0 0.0
    %1255 = vmatprep.subr.mxu0 0.0
    %1256 = vmatpush1.msra.mxu0 0.0
    %1257 = vmatprep.subr.mxu0 0.0
    %1258 = vmatpush1.msra.mxu0 0.0
    %1259 = vmatprep.subr.mxu0 0.0
    %1260 = vmatpush1.msra.mxu0 0.0
    %1261 = vmatprep.subr.mxu0 0.0
    %1262 = vmatpush1.msra.mxu0 0.0
    %1263 = vmatprep.subr.mxu0 0.0
    %1264 = vmatpush1.msra.mxu0 0.0
    %1265 = vmatprep.subr.mxu0 0.0
    %1266 = vmatpush1.msra.mxu0 0.0
    %1267 = vmatprep.subr.mxu0 0.0
    %1268 = vmatpush1.msra.mxu0 0.0
    %1269 = vmatprep.subr.mxu0 0.0
    %1270 = vmatpush1.msra.mxu0 0.0
    %1271 = vmatprep.mubr.f32.mxu0 0.0
    %1272 = vmatmul.mubr.f32.gmra.mrb[0].mxu0 %v1202
    %v1273 = vpop.f32.mrb[0].mxu0
    %v1274 = vadd.f32 %v1200, %v1273
    %v1275 = vpop.f32.mrb[0].mxu0
    %1276 = vmatprep.mubr.f32.mxu0 0.0
    %1277 = vmatmul.mubr.f32.gmra.mrb[0].mxu0 %v1205
    %v1278 = vpop.f32.mrb[0].mxu0
    %v1279 = vadd.f32 %v1200, %v1278
    %v1280 = vpop.f32.mrb[0].mxu0
    %1281 = vdwg.mxu0
    %v1283 = vrot.slane %v1279, 6
    %v1285 = vrot.slane %v1279, 2
    %v1288 = vrot.slane %v1274, 6
    %v1290 = vrot.slane %v1274, 2
    %v1292 = vsel %vm194, %v1283, %v1285
    %v1293 = vsel %vm198, %v1292, %v1283
    %v1294 = vsel %vm202, %v1293, %v1285
    %v1295 = vsel %vm194, %v1288, %v1290
    %v1296 = vsel %vm198, %v1295, %v1288
    %v1297 = vsel %vm202, %v1296, %v1290
    %v1298 = vsel %vm225, %v1274, %v1294
    %v1299 = vsel %vm225, %v1279, %v1297
    %1300 = vst [vmem:[#allocation3] sm:$0xff] %v1298
    %1301 = vst [vmem:[#allocation3 + $0x8] sm:$0xff] %v1299
    %v1302 = vld [vmem:[#allocation3] sm:$0x3]
    %1303 = vmatprep.subr.mxu0 0.0
    %1304 = vmatpush1.msra.mxu0 %v240
    %1305 = vmatprep.subr.mxu0 0.0
    %1306 = vmatpush1.msra.mxu0 %v241
    %1307 = vmatprep.subr.mxu0 0.0
    %1308 = vmatpush1.msra.mxu0 %v242
    %1309 = vmatprep.subr.mxu0 0.0
    %1310 = vmatpush1.msra.mxu0 %v243
    %1311 = vmatprep.subr.mxu0 0.0
    %1312 = vmatpush1.msra.mxu0 0.0
    %1313 = vmatprep.subr.mxu0 0.0
    %1314 = vmatpush1.msra.mxu0 0.0
    %1315 = vmatprep.subr.mxu0 0.0
    %1316 = vmatpush1.msra.mxu0 0.0
    %1317 = vmatprep.subr.mxu0 0.0
    %1318 = vmatpush1.msra.mxu0 0.0
    %1319 = vmatprep.subr.mxu0 0.0
    %1320 = vmatpush1.msra.mxu0 0.0
    %1321 = vmatprep.subr.mxu0 0.0
    %1322 = vmatpush1.msra.mxu0 0.0
    %1323 = vmatprep.subr.mxu0 0.0
    %1324 = vmatpush1.msra.mxu0 0.0
    %1325 = vmatprep.subr.mxu0 0.0
    %1326 = vmatpush1.msra.mxu0 0.0
    %1327 = vmatprep.subr.mxu0 0.0
    %1328 = vmatpush1.msra.mxu0 0.0
    %1329 = vmatprep.subr.mxu0 0.0
    %1330 = vmatpush1.msra.mxu0 0.0
    %1331 = vmatprep.subr.mxu0 0.0
    %1332 = vmatpush1.msra.mxu0 0.0
    %1333 = vmatprep.subr.mxu0 0.0
    %1334 = vmatpush1.msra.mxu0 0.0
    %1335 = vmatprep.subr.mxu0 0.0
    %1336 = vmatpush1.msra.mxu0 0.0
    %1337 = vmatprep.subr.mxu0 0.0
    %1338 = vmatpush1.msra.mxu0 0.0
    %1339 = vmatprep.subr.mxu0 0.0
    %1340 = vmatpush1.msra.mxu0 0.0
    %1341 = vmatprep.subr.mxu0 0.0
    %1342 = vmatpush1.msra.mxu0 0.0
    %1343 = vmatprep.subr.mxu0 0.0
    %1344 = vmatpush1.msra.mxu0 0.0
    %1345 = vmatprep.subr.mxu0 0.0
    %1346 = vmatpush1.msra.mxu0 0.0
    %1347 = vmatprep.subr.mxu0 0.0
    %1348 = vmatpush1.msra.mxu0 0.0
    %1349 = vmatprep.subr.mxu0 0.0
    %1350 = vmatpush1.msra.mxu0 0.0
    %1351 = vmatprep.subr.mxu0 0.0
    %1352 = vmatpush1.msra.mxu0 0.0
    %1353 = vmatprep.subr.mxu0 0.0
    %1354 = vmatpush1.msra.mxu0 0.0
    %1355 = vmatprep.subr.mxu0 0.0
    %1356 = vmatpush1.msra.mxu0 0.0
    %1357 = vmatprep.subr.mxu0 0.0
    %1358 = vmatpush1.msra.mxu0 0.0
    %1359 = vmatprep.subr.mxu0 0.0
    %1360 = vmatpush1.msra.mxu0 0.0
    %1361 = vmatprep.subr.mxu0 0.0
    %1362 = vmatpush1.msra.mxu0 0.0
    %1363 = vmatprep.subr.mxu0 0.0
    %1364 = vmatpush1.msra.mxu0 0.0
    %1365 = vmatprep.subr.mxu0 0.0
    %1366 = vmatpush1.msra.mxu0 0.0
    %1367 = vmatprep.mubr.f32.mxu0 0.0
    %1368 = vmatmul.mubr.f32.gmra.mrb[0].mxu0 %v358
    %v1369 = vpop.f32.mrb[0].mxu0
    %v1370 = vadd.f32 %v1302, %v1369
    %v1371 = vpop.f32.mrb[0].mxu0
    %1372 = vdwg.mxu0
    %v1373 = vxor.u32 %v1370, 2147483648
    %v1374 = vmul.f32 %v1373, 1.442695
    %v1375 = vpow.pop %v1374
    %v1376 = vadd.f32 %v1375, 1.0
    %v1377 = vrcp.pop %v1376
    %v1378 = vmul.f32 1.0, %v1377
    %v1379 = vmul.f32 %v1378, 0.0
    %v1380 = vtanh.pop %v1370
    %1382 = vrot.lane.b32.xlu0 %v1380, 32
    %v1383 = vpop.permute.xlu0 %1382
    %v1385 = vmul.f32 %v1378, %v1383
    %1387 = vrot.lane.b32.xlu0 %v1385, 32
    %v1388 = vpop.permute.xlu0 %1387
    %v1390 = vadd.f32 %v1379, %v1388
    %v1391 = vtanh.pop %v1390
    %1393 = vrot.lane.b32.xlu0 %v1391, 32
    %v1394 = vpop.permute.xlu0 %1393
    %v1396 = vmul.f32 %v1378, %v1394
    %v1397 = vld [vmem:[#allocation3 + $0x2] sm:$0x3]
    %1399 = vrot.lane.b32.xlu0 %v1396, 64
    %v1400 = vpop.permute.xlu0 %1399
    %v1401 = vsel %vm254, %v1400, 0
    %1403 = vmatprep.subr.mxu0 0.0
    %1404 = vmatpush1.msra.mxu0 %v240
    %1405 = vmatprep.subr.mxu0 0.0
    %1406 = vmatpush1.msra.mxu0 %v241
    %1407 = vmatprep.subr.mxu0 0.0
    %1408 = vmatpush1.msra.mxu0 %v242
    %1409 = vmatprep.subr.mxu0 0.0
    %1410 = vmatpush1.msra.mxu0 %v243
    %1411 = vmatprep.subr.mxu0 0.0
    %1412 = vmatpush1.msra.mxu0 0.0
    %1413 = vmatprep.subr.mxu0 0.0
    %1414 = vmatpush1.msra.mxu0 0.0
    %1415 = vmatprep.subr.mxu0 0.0
    %1416 = vmatpush1.msra.mxu0 0.0
    %1417 = vmatprep.subr.mxu0 0.0
    %1418 = vmatpush1.msra.mxu0 0.0
    %1419 = vmatprep.subr.mxu0 0.0
    %1420 = vmatpush1.msra.mxu0 0.0
    %1421 = vmatprep.subr.mxu0 0.0
    %1422 = vmatpush1.msra.mxu0 0.0
    %1423 = vmatprep.subr.mxu0 0.0
    %1424 = vmatpush1.msra.mxu0 0.0
    %1425 = vmatprep.subr.mxu0 0.0
    %1426 = vmatpush1.msra.mxu0 0.0
    %1427 = vmatprep.subr.mxu0 0.0
    %1428 = vmatpush1.msra.mxu0 0.0
    %1429 = vmatprep.subr.mxu0 0.0
    %1430 = vmatpush1.msra.mxu0 0.0
    %1431 = vmatprep.subr.mxu0 0.0
    %1432 = vmatpush1.msra.mxu0 0.0
    %1433 = vmatprep.subr.mxu0 0.0
    %1434 = vmatpush1.msra.mxu0 0.0
    %1435 = vmatprep.subr.mxu0 0.0
    %1436 = vmatpush1.msra.mxu0 0.0
    %1437 = vmatprep.subr.mxu0 0.0
    %1438 = vmatpush1.msra.mxu0 0.0
    %1439 = vmatprep.subr.mxu0 0.0
    %1440 = vmatpush1.msra.mxu0 0.0
    %1441 = vmatprep.subr.mxu0 0.0
    %1442 = vmatpush1.msra.mxu0 0.0
    %1443 = vmatprep.subr.mxu0 0.0
    %1444 = vmatpush1.msra.mxu0 0.0
    %1445 = vmatprep.subr.mxu0 0.0
    %1446 = vmatpush1.msra.mxu0 0.0
    %1447 = vmatprep.subr.mxu0 0.0
    %1448 = vmatpush1.msra.mxu0 0.0
    %1449 = vmatprep.subr.mxu0 0.0
    %1450 = vmatpush1.msra.mxu0 0.0
    %1451 = vmatprep.subr.mxu0 0.0
    %1452 = vmatpush1.msra.mxu0 0.0
    %1453 = vmatprep.subr.mxu0 0.0
    %1454 = vmatpush1.msra.mxu0 0.0
    %1455 = vmatprep.subr.mxu0 0.0
    %1456 = vmatpush1.msra.mxu0 0.0
    %1457 = vmatprep.subr.mxu0 0.0
    %1458 = vmatpush1.msra.mxu0 0.0
    %1459 = vmatprep.subr.mxu0 0.0
    %1460 = vmatpush1.msra.mxu0 0.0
    %1461 = vmatprep.subr.mxu0 0.0
    %1462 = vmatpush1.msra.mxu0 0.0
    %1463 = vmatprep.subr.mxu0 0.0
    %1464 = vmatpush1.msra.mxu0 0.0
    %1465 = vmatprep.subr.mxu0 0.0
    %1466 = vmatpush1.msra.mxu0 0.0
    %1467 = vmatprep.mubr.f32.mxu0 0.0
    %1468 = vmatmul.mubr.f32.gmra.mrb[0].mxu0 %v1401
    %v1469 = vpop.f32.mrb[0].mxu0
    %v1470 = vadd.f32 %v1397, %v1469
    %v1471 = vpop.f32.mrb[0].mxu0
    %1472 = vdwg.mxu0
    %v1473 = vxor.u32 %v1470, 2147483648
    %v1474 = vmul.f32 %v1473, 1.442695
    %v1475 = vpow.pop %v1474
    %v1476 = vadd.f32 %v1475, 1.0
    %v1477 = vrcp.pop %v1476
    %v1478 = vmul.f32 1.0, %v1477
    %v1479 = vmul.f32 %v1478, %v1390
    %v1480 = vtanh.pop %v1470
    %1482 = vrot.lane.b32.xlu0 %v1480, 32
    %v1483 = vpop.permute.xlu0 %1482
    %v1485 = vmul.f32 %v1478, %v1483
    %1487 = vrot.lane.b32.xlu0 %v1485, 32
    %v1488 = vpop.permute.xlu0 %1487
    %v1490 = vadd.f32 %v1479, %v1488
    %v1491 = vtanh.pop %v1490
    %1493 = vrot.lane.b32.xlu0 %v1491, 32
    %v1494 = vpop.permute.xlu0 %1493
    %v1496 = vmul.f32 %v1478, %v1494
    %v1497 = vld [vmem:[#allocation3 + $0x4] sm:$0x3]
    %1499 = vrot.lane.b32.xlu0 %v1496, 64
    %v1500 = vpop.permute.xlu0 %1499
    %v1501 = vsel %vm254, %v1500, 0
    %1503 = vmatprep.subr.mxu0 0.0
    %1504 = vmatpush1.msra.mxu0 %v240
    %1505 = vmatprep.subr.mxu0 0.0
    %1506 = vmatpush1.msra.mxu0 %v241
    %1507 = vmatprep.subr.mxu0 0.0
    %1508 = vmatpush1.msra.mxu0 %v242
    %1509 = vmatprep.subr.mxu0 0.0
    %1510 = vmatpush1.msra.mxu0 %v243
    %1511 = vmatprep.subr.mxu0 0.0
    %1512 = vmatpush1.msra.mxu0 0.0
    %1513 = vmatprep.subr.mxu0 0.0
    %1514 = vmatpush1.msra.mxu0 0.0
    %1515 = vmatprep.subr.mxu0 0.0
    %1516 = vmatpush1.msra.mxu0 0.0
    %1517 = vmatprep.subr.mxu0 0.0
    %1518 = vmatpush1.msra.mxu0 0.0
    %1519 = vmatprep.subr.mxu0 0.0
    %1520 = vmatpush1.msra.mxu0 0.0
    %1521 = vmatprep.subr.mxu0 0.0
    %1522 = vmatpush1.msra.mxu0 0.0
    %1523 = vmatprep.subr.mxu0 0.0
    %1524 = vmatpush1.msra.mxu0 0.0
    %1525 = vmatprep.subr.mxu0 0.0
    %1526 = vmatpush1.msra.mxu0 0.0
    %1527 = vmatprep.subr.mxu0 0.0
    %1528 = vmatpush1.msra.mxu0 0.0
    %1529 = vmatprep.subr.mxu0 0.0
    %1530 = vmatpush1.msra.mxu0 0.0
    %1531 = vmatprep.subr.mxu0 0.0
    %1532 = vmatpush1.msra.mxu0 0.0
    %1533 = vmatprep.subr.mxu0 0.0
    %1534 = vmatpush1.msra.mxu0 0.0
    %1535 = vmatprep.subr.mxu0 0.0
    %1536 = vmatpush1.msra.mxu0 0.0
    %1537 = vmatprep.subr.mxu0 0.0
    %1538 = vmatpush1.msra.mxu0 0.0
    %1539 = vmatprep.subr.mxu0 0.0
    %1540 = vmatpush1.msra.mxu0 0.0
    %1541 = vmatprep.subr.mxu0 0.0
    %1542 = vmatpush1.msra.mxu0 0.0
    %1543 = vmatprep.subr.mxu0 0.0
    %1544 = vmatpush1.msra.mxu0 0.0
    %1545 = vmatprep.subr.mxu0 0.0
    %1546 = vmatpush1.msra.mxu0 0.0
    %1547 = vmatprep.subr.mxu0 0.0
    %1548 = vmatpush1.msra.mxu0 0.0
    %1549 = vmatprep.subr.mxu0 0.0
    %1550 = vmatpush1.msra.mxu0 0.0
    %1551 = vmatprep.subr.mxu0 0.0
    %1552 = vmatpush1.msra.mxu0 0.0
    %1553 = vmatprep.subr.mxu0 0.0
    %1554 = vmatpush1.msra.mxu0 0.0
    %1555 = vmatprep.subr.mxu0 0.0
    %1556 = vmatpush1.msra.mxu0 0.0
    %1557 = vmatprep.subr.mxu0 0.0
    %1558 = vmatpush1.msra.mxu0 0.0
    %1559 = vmatprep.subr.mxu0 0.0
    %1560 = vmatpush1.msra.mxu0 0.0
    %1561 = vmatprep.subr.mxu0 0.0
    %1562 = vmatpush1.msra.mxu0 0.0
    %1563 = vmatprep.subr.mxu0 0.0
    %1564 = vmatpush1.msra.mxu0 0.0
    %1565 = vmatprep.subr.mxu0 0.0
    %1566 = vmatpush1.msra.mxu0 0.0
    %1567 = vmatprep.mubr.f32.mxu0 0.0
    %1568 = vmatmul.mubr.f32.gmra.mrb[0].mxu0 %v1501
    %v1569 = vpop.f32.mrb[0].mxu0
    %v1570 = vadd.f32 %v1497, %v1569
    %v1571 = vpop.f32.mrb[0].mxu0
    %1572 = vdwg.mxu0
    %v1573 = vxor.u32 %v1570, 2147483648
    %v1574 = vmul.f32 %v1573, 1.442695
    %v1575 = vpow.pop %v1574
    %v1576 = vadd.f32 %v1575, 1.0
    %v1577 = vrcp.pop %v1576
    %v1578 = vmul.f32 1.0, %v1577
    %v1579 = vmul.f32 %v1578, %v1490
    %v1580 = vtanh.pop %v1570
    %1582 = vrot.lane.b32.xlu0 %v1580, 32
    %v1583 = vpop.permute.xlu0 %1582
    %v1585 = vmul.f32 %v1578, %v1583
    %1587 = vrot.lane.b32.xlu0 %v1585, 32
    %v1588 = vpop.permute.xlu0 %1587
    %v1590 = vadd.f32 %v1579, %v1588
    %v1591 = vtanh.pop %v1590
    %1593 = vrot.lane.b32.xlu0 %v1591, 32
    %v1594 = vpop.permute.xlu0 %1593
    %v1596 = vmul.f32 %v1578, %v1594
    %v1597 = vld [vmem:[#allocation3 + $0x6] sm:$0x3]
    %1599 = vrot.lane.b32.xlu0 %v1596, 64
    %v1600 = vpop.permute.xlu0 %1599
    %v1601 = vsel %vm254, %v1600, 0
    %1603 = vmatprep.subr.mxu0 0.0
    %1604 = vmatpush1.msra.mxu0 %v240
    %1605 = vmatprep.subr.mxu0 0.0
    %1606 = vmatpush1.msra.mxu0 %v241
    %1607 = vmatprep.subr.mxu0 0.0
    %1608 = vmatpush1.msra.mxu0 %v242
    %1609 = vmatprep.subr.mxu0 0.0
    %1610 = vmatpush1.msra.mxu0 %v243
    %1611 = vmatprep.subr.mxu0 0.0
    %1612 = vmatpush1.msra.mxu0 0.0
    %1613 = vmatprep.subr.mxu0 0.0
    %1614 = vmatpush1.msra.mxu0 0.0
    %1615 = vmatprep.subr.mxu0 0.0
    %1616 = vmatpush1.msra.mxu0 0.0
    %1617 = vmatprep.subr.mxu0 0.0
    %1618 = vmatpush1.msra.mxu0 0.0
    %1619 = vmatprep.subr.mxu0 0.0
    %1620 = vmatpush1.msra.mxu0 0.0
    %1621 = vmatprep.subr.mxu0 0.0
    %1622 = vmatpush1.msra.mxu0 0.0
    %1623 = vmatprep.subr.mxu0 0.0
    %1624 = vmatpush1.msra.mxu0 0.0
    %1625 = vmatprep.subr.mxu0 0.0
    %1626 = vmatpush1.msra.mxu0 0.0
    %1627 = vmatprep.subr.mxu0 0.0
    %1628 = vmatpush1.msra.mxu0 0.0
    %1629 = vmatprep.subr.mxu0 0.0
    %1630 = vmatpush1.msra.mxu0 0.0
    %1631 = vmatprep.subr.mxu0 0.0
    %1632 = vmatpush1.msra.mxu0 0.0
    %1633 = vmatprep.subr.mxu0 0.0
    %1634 = vmatpush1.msra.mxu0 0.0
    %1635 = vmatprep.subr.mxu0 0.0
    %1636 = vmatpush1.msra.mxu0 0.0
    %1637 = vmatprep.subr.mxu0 0.0
    %1638 = vmatpush1.msra.mxu0 0.0
    %1639 = vmatprep.subr.mxu0 0.0
    %1640 = vmatpush1.msra.mxu0 0.0
    %1641 = vmatprep.subr.mxu0 0.0
    %1642 = vmatpush1.msra.mxu0 0.0
    %1643 = vmatprep.subr.mxu0 0.0
    %1644 = vmatpush1.msra.mxu0 0.0
    %1645 = vmatprep.subr.mxu0 0.0
    %1646 = vmatpush1.msra.mxu0 0.0
    %1647 = vmatprep.subr.mxu0 0.0
    %1648 = vmatpush1.msra.mxu0 0.0
    %1649 = vmatprep.subr.mxu0 0.0
    %1650 = vmatpush1.msra.mxu0 0.0
    %1651 = vmatprep.subr.mxu0 0.0
    %1652 = vmatpush1.msra.mxu0 0.0
    %1653 = vmatprep.subr.mxu0 0.0
    %1654 = vmatpush1.msra.mxu0 0.0
    %1655 = vmatprep.subr.mxu0 0.0
    %1656 = vmatpush1.msra.mxu0 0.0
    %1657 = vmatprep.subr.mxu0 0.0
    %1658 = vmatpush1.msra.mxu0 0.0
    %1659 = vmatprep.subr.mxu0 0.0
    %1660 = vmatpush1.msra.mxu0 0.0
    %1661 = vmatprep.subr.mxu0 0.0
    %1662 = vmatpush1.msra.mxu0 0.0
    %1663 = vmatprep.subr.mxu0 0.0
    %1664 = vmatpush1.msra.mxu0 0.0
    %1665 = vmatprep.subr.mxu0 0.0
    %1666 = vmatpush1.msra.mxu0 0.0
    %1667 = vmatprep.mubr.f32.mxu0 0.0
    %1668 = vmatmul.mubr.f32.gmra.mrb[0].mxu0 %v1601
    %v1669 = vpop.f32.mrb[0].mxu0
    %v1670 = vadd.f32 %v1597, %v1669
    %v1671 = vpop.f32.mrb[0].mxu0
    %1672 = vdwg.mxu0
    %v1673 = vxor.u32 %v1670, 2147483648
    %v1674 = vmul.f32 %v1673, 1.442695
    %v1675 = vpow.pop %v1674
    %v1676 = vadd.f32 %v1675, 1.0
    %v1677 = vrcp.pop %v1676
    %v1678 = vmul.f32 1.0, %v1677
    %v1679 = vmul.f32 %v1678, %v1590
    %v1680 = vtanh.pop %v1670
    %1682 = vrot.lane.b32.xlu0 %v1680, 32
    %v1683 = vpop.permute.xlu0 %1682
    %v1685 = vmul.f32 %v1678, %v1683
    %1687 = vrot.lane.b32.xlu0 %v1685, 32
    %v1688 = vpop.permute.xlu0 %1687
    %v1690 = vadd.f32 %v1679, %v1688
    %v1691 = vtanh.pop %v1690
    %1693 = vrot.lane.b32.xlu0 %v1691, 32
    %v1694 = vpop.permute.xlu0 %1693
    %v1696 = vmul.f32 %v1678, %v1694
    %v1697 = vld [vmem:[#allocation3 + $0x8] sm:$0x3]
    %1699 = vrot.lane.b32.xlu0 %v1696, 64
    %v1700 = vpop.permute.xlu0 %1699
    %v1701 = vsel %vm254, %v1700, 0
    %1703 = vmatprep.subr.mxu0 0.0
    %1704 = vmatpush1.msra.mxu0 %v240
    %1705 = vmatprep.subr.mxu0 0.0
    %1706 = vmatpush1.msra.mxu0 %v241
    %1707 = vmatprep.subr.mxu0 0.0
    %1708 = vmatpush1.msra.mxu0 %v242
    %1709 = vmatprep.subr.mxu0 0.0
    %1710 = vmatpush1.msra.mxu0 %v243
    %1711 = vmatprep.subr.mxu0 0.0
    %1712 = vmatpush1.msra.mxu0 0.0
    %1713 = vmatprep.subr.mxu0 0.0
    %1714 = vmatpush1.msra.mxu0 0.0
    %1715 = vmatprep.subr.mxu0 0.0
    %1716 = vmatpush1.msra.mxu0 0.0
    %1717 = vmatprep.subr.mxu0 0.0
    %1718 = vmatpush1.msra.mxu0 0.0
    %1719 = vmatprep.subr.mxu0 0.0
    %1720 = vmatpush1.msra.mxu0 0.0
    %1721 = vmatprep.subr.mxu0 0.0
    %1722 = vmatpush1.msra.mxu0 0.0
    %1723 = vmatprep.subr.mxu0 0.0
    %1724 = vmatpush1.msra.mxu0 0.0
    %1725 = vmatprep.subr.mxu0 0.0
    %1726 = vmatpush1.msra.mxu0 0.0
    %1727 = vmatprep.subr.mxu0 0.0
    %1728 = vmatpush1.msra.mxu0 0.0
    %1729 = vmatprep.subr.mxu0 0.0
    %1730 = vmatpush1.msra.mxu0 0.0
    %1731 = vmatprep.subr.mxu0 0.0
    %1732 = vmatpush1.msra.mxu0 0.0
    %1733 = vmatprep.subr.mxu0 0.0
    %1734 = vmatpush1.msra.mxu0 0.0
    %1735 = vmatprep.subr.mxu0 0.0
    %1736 = vmatpush1.msra.mxu0 0.0
    %1737 = vmatprep.subr.mxu0 0.0
    %1738 = vmatpush1.msra.mxu0 0.0
    %1739 = vmatprep.subr.mxu0 0.0
    %1740 = vmatpush1.msra.mxu0 0.0
    %1741 = vmatprep.subr.mxu0 0.0
    %1742 = vmatpush1.msra.mxu0 0.0
    %1743 = vmatprep.subr.mxu0 0.0
    %1744 = vmatpush1.msra.mxu0 0.0
    %1745 = vmatprep.subr.mxu0 0.0
    %1746 = vmatpush1.msra.mxu0 0.0
    %1747 = vmatprep.subr.mxu0 0.0
    %1748 = vmatpush1.msra.mxu0 0.0
    %1749 = vmatprep.subr.mxu0 0.0
    %1750 = vmatpush1.msra.mxu0 0.0
    %1751 = vmatprep.subr.mxu0 0.0
    %1752 = vmatpush1.msra.mxu0 0.0
    %1753 = vmatprep.subr.mxu0 0.0
    %1754 = vmatpush1.msra.mxu0 0.0
    %1755 = vmatprep.subr.mxu0 0.0
    %1756 = vmatpush1.msra.mxu0 0.0
    %1757 = vmatprep.subr.mxu0 0.0
    %1758 = vmatpush1.msra.mxu0 0.0
    %1759 = vmatprep.subr.mxu0 0.0
    %1760 = vmatpush1.msra.mxu0 0.0
    %1761 = vmatprep.subr.mxu0 0.0
    %1762 = vmatpush1.msra.mxu0 0.0
    %1763 = vmatprep.subr.mxu0 0.0
    %1764 = vmatpush1.msra.mxu0 0.0
    %1765 = vmatprep.subr.mxu0 0.0
    %1766 = vmatpush1.msra.mxu0 0.0
    %1767 = vmatprep.mubr.f32.mxu0 0.0
    %1768 = vmatmul.mubr.f32.gmra.mrb[0].mxu0 %v1701
    %v1769 = vpop.f32.mrb[0].mxu0
    %v1770 = vadd.f32 %v1697, %v1769
    %v1771 = vpop.f32.mrb[0].mxu0
    %1772 = vdwg.mxu0
    %v1773 = vxor.u32 %v1770, 2147483648
    %v1774 = vmul.f32 %v1773, 1.442695
    %v1775 = vpow.pop %v1774
    %v1776 = vadd.f32 %v1775, 1.0
    %v1777 = vrcp.pop %v1776
    %v1778 = vmul.f32 1.0, %v1777
    %v1779 = vmul.f32 %v1778, %v1690
    %v1780 = vtanh.pop %v1770
    %1782 = vrot.lane.b32.xlu0 %v1780, 32
    %v1783 = vpop.permute.xlu0 %1782
    %v1785 = vmul.f32 %v1778, %v1783
    %1787 = vrot.lane.b32.xlu0 %v1785, 32
    %v1788 = vpop.permute.xlu0 %1787
    %v1790 = vadd.f32 %v1779, %v1788
    %v1791 = vtanh.pop %v1790
    %1793 = vrot.lane.b32.xlu0 %v1791, 32
    %v1794 = vpop.permute.xlu0 %1793
    %v1796 = vmul.f32 %v1778, %v1794
    %v1797 = vld [vmem:[#allocation3 + $0xa] sm:$0x3]
    %1799 = vrot.lane.b32.xlu0 %v1796, 64
    %v1800 = vpop.permute.xlu0 %1799
    %v1801 = vsel %vm254, %v1800, 0
    %1803 = vmatprep.subr.mxu0 0.0
    %1804 = vmatpush1.msra.mxu0 %v240
    %1805 = vmatprep.subr.mxu0 0.0
    %1806 = vmatpush1.msra.mxu0 %v241
    %1807 = vmatprep.subr.mxu0 0.0
    %1808 = vmatpush1.msra.mxu0 %v242
    %1809 = vmatprep.subr.mxu0 0.0
    %1810 = vmatpush1.msra.mxu0 %v243
    %1811 = vmatprep.subr.mxu0 0.0
    %1812 = vmatpush1.msra.mxu0 0.0
    %1813 = vmatprep.subr.mxu0 0.0
    %1814 = vmatpush1.msra.mxu0 0.0
    %1815 = vmatprep.subr.mxu0 0.0
    %1816 = vmatpush1.msra.mxu0 0.0
    %1817 = vmatprep.subr.mxu0 0.0
    %1818 = vmatpush1.msra.mxu0 0.0
    %1819 = vmatprep.subr.mxu0 0.0
    %1820 = vmatpush1.msra.mxu0 0.0
    %1821 = vmatprep.subr.mxu0 0.0
    %1822 = vmatpush1.msra.mxu0 0.0
    %1823 = vmatprep.subr.mxu0 0.0
    %1824 = vmatpush1.msra.mxu0 0.0
    %1825 = vmatprep.subr.mxu0 0.0
    %1826 = vmatpush1.msra.mxu0 0.0
    %1827 = vmatprep.subr.mxu0 0.0
    %1828 = vmatpush1.msra.mxu0 0.0
    %1829 = vmatprep.subr.mxu0 0.0
    %1830 = vmatpush1.msra.mxu0 0.0
    %1831 = vmatprep.subr.mxu0 0.0
    %1832 = vmatpush1.msra.mxu0 0.0
    %1833 = vmatprep.subr.mxu0 0.0
    %1834 = vmatpush1.msra.mxu0 0.0
    %1835 = vmatprep.subr.mxu0 0.0
    %1836 = vmatpush1.msra.mxu0 0.0
    %1837 = vmatprep.subr.mxu0 0.0
    %1838 = vmatpush1.msra.mxu0 0.0
    %1839 = vmatprep.subr.mxu0 0.0
    %1840 = vmatpush1.msra.mxu0 0.0
    %1841 = vmatprep.subr.mxu0 0.0
    %1842 = vmatpush1.msra.mxu0 0.0
    %1843 = vmatprep.subr.mxu0 0.0
    %1844 = vmatpush1.msra.mxu0 0.0
    %1845 = vmatprep.subr.mxu0 0.0
    %1846 = vmatpush1.msra.mxu0 0.0
    %1847 = vmatprep.subr.mxu0 0.0
    %1848 = vmatpush1.msra.mxu0 0.0
    %1849 = vmatprep.subr.mxu0 0.0
    %1850 = vmatpush1.msra.mxu0 0.0
    %1851 = vmatprep.subr.mxu0 0.0
    %1852 = vmatpush1.msra.mxu0 0.0
    %1853 = vmatprep.subr.mxu0 0.0
    %1854 = vmatpush1.msra.mxu0 0.0
    %1855 = vmatprep.subr.mxu0 0.0
    %1856 = vmatpush1.msra.mxu0 0.0
    %1857 = vmatprep.subr.mxu0 0.0
    %1858 = vmatpush1.msra.mxu0 0.0
    %1859 = vmatprep.subr.mxu0 0.0
    %1860 = vmatpush1.msra.mxu0 0.0
    %1861 = vmatprep.subr.mxu0 0.0
    %1862 = vmatpush1.msra.mxu0 0.0
    %1863 = vmatprep.subr.mxu0 0.0
    %1864 = vmatpush1.msra.mxu0 0.0
    %1865 = vmatprep.subr.mxu0 0.0
    %1866 = vmatpush1.msra.mxu0 0.0
    %1867 = vmatprep.mubr.f32.mxu0 0.0
    %1868 = vmatmul.mubr.f32.gmra.mrb[0].mxu0 %v1801
    %v1869 = vpop.f32.mrb[0].mxu0
    %v1870 = vadd.f32 %v1797, %v1869
    %v1871 = vpop.f32.mrb[0].mxu0
    %1872 = vdwg.mxu0
    %v1873 = vxor.u32 %v1870, 2147483648
    %v1874 = vmul.f32 %v1873, 1.442695
    %v1875 = vpow.pop %v1874
    %v1876 = vadd.f32 %v1875, 1.0
    %v1877 = vrcp.pop %v1876
    %v1878 = vmul.f32 1.0, %v1877
    %v1879 = vmul.f32 %v1878, %v1790
    %v1880 = vtanh.pop %v1870
    %1882 = vrot.lane.b32.xlu0 %v1880, 32
    %v1883 = vpop.permute.xlu0 %1882
    %v1885 = vmul.f32 %v1878, %v1883
    %1887 = vrot.lane.b32.xlu0 %v1885, 32
    %v1888 = vpop.permute.xlu0 %1887
    %v1890 = vadd.f32 %v1879, %v1888
    %v1891 = vtanh.pop %v1890
    %1893 = vrot.lane.b32.xlu0 %v1891, 32
    %v1894 = vpop.permute.xlu0 %1893
    %v1896 = vmul.f32 %v1878, %v1894
    %v1897 = vld [vmem:[#allocation3 + $0xc] sm:$0x3]
    %1899 = vrot.lane.b32.xlu0 %v1896, 64
    %v1900 = vpop.permute.xlu0 %1899
    %v1901 = vsel %vm254, %v1900, 0
    %1903 = vmatprep.subr.mxu0 0.0
    %1904 = vmatpush1.msra.mxu0 %v240
    %1905 = vmatprep.subr.mxu0 0.0
    %1906 = vmatpush1.msra.mxu0 %v241
    %1907 = vmatprep.subr.mxu0 0.0
    %1908 = vmatpush1.msra.mxu0 %v242
    %1909 = vmatprep.subr.mxu0 0.0
    %1910 = vmatpush1.msra.mxu0 %v243
    %1911 = vmatprep.subr.mxu0 0.0
    %1912 = vmatpush1.msra.mxu0 0.0
    %1913 = vmatprep.subr.mxu0 0.0
    %1914 = vmatpush1.msra.mxu0 0.0
    %1915 = vmatprep.subr.mxu0 0.0
    %1916 = vmatpush1.msra.mxu0 0.0
    %1917 = vmatprep.subr.mxu0 0.0
    %1918 = vmatpush1.msra.mxu0 0.0
    %1919 = vmatprep.subr.mxu0 0.0
    %1920 = vmatpush1.msra.mxu0 0.0
    %1921 = vmatprep.subr.mxu0 0.0
    %1922 = vmatpush1.msra.mxu0 0.0
    %1923 = vmatprep.subr.mxu0 0.0
    %1924 = vmatpush1.msra.mxu0 0.0
    %1925 = vmatprep.subr.mxu0 0.0
    %1926 = vmatpush1.msra.mxu0 0.0
    %1927 = vmatprep.subr.mxu0 0.0
    %1928 = vmatpush1.msra.mxu0 0.0
    %1929 = vmatprep.subr.mxu0 0.0
    %1930 = vmatpush1.msra.mxu0 0.0
    %1931 = vmatprep.subr.mxu0 0.0
    %1932 = vmatpush1.msra.mxu0 0.0
    %1933 = vmatprep.subr.mxu0 0.0
    %1934 = vmatpush1.msra.mxu0 0.0
    %1935 = vmatprep.subr.mxu0 0.0
    %1936 = vmatpush1.msra.mxu0 0.0
    %1937 = vmatprep.subr.mxu0 0.0
    %1938 = vmatpush1.msra.mxu0 0.0
    %1939 = vmatprep.subr.mxu0 0.0
    %1940 = vmatpush1.msra.mxu0 0.0
    %1941 = vmatprep.subr.mxu0 0.0
    %1942 = vmatpush1.msra.mxu0 0.0
    %1943 = vmatprep.subr.mxu0 0.0
    %1944 = vmatpush1.msra.mxu0 0.0
    %1945 = vmatprep.subr.mxu0 0.0
    %1946 = vmatpush1.msra.mxu0 0.0
    %1947 = vmatprep.subr.mxu0 0.0
    %1948 = vmatpush1.msra.mxu0 0.0
    %1949 = vmatprep.subr.mxu0 0.0
    %1950 = vmatpush1.msra.mxu0 0.0
    %1951 = vmatprep.subr.mxu0 0.0
    %1952 = vmatpush1.msra.mxu0 0.0
    %1953 = vmatprep.subr.mxu0 0.0
    %1954 = vmatpush1.msra.mxu0 0.0
    %1955 = vmatprep.subr.mxu0 0.0
    %1956 = vmatpush1.msra.mxu0 0.0
    %1957 = vmatprep.subr.mxu0 0.0
    %1958 = vmatpush1.msra.mxu0 0.0
    %1959 = vmatprep.subr.mxu0 0.0
    %1960 = vmatpush1.msra.mxu0 0.0
    %1961 = vmatprep.subr.mxu0 0.0
    %1962 = vmatpush1.msra.mxu0 0.0
    %1963 = vmatprep.subr.mxu0 0.0
    %1964 = vmatpush1.msra.mxu0 0.0
    %1965 = vmatprep.subr.mxu0 0.0
    %1966 = vmatpush1.msra.mxu0 0.0
    %1967 = vmatprep.mubr.f32.mxu0 0.0
    %1968 = vmatmul.mubr.f32.gmra.mrb[0].mxu0 %v1901
    %v1969 = vpop.f32.mrb[0].mxu0
    %v1970 = vadd.f32 %v1897, %v1969
    %v1971 = vpop.f32.mrb[0].mxu0
    %1972 = vdwg.mxu0
    %v1973 = vxor.u32 %v1970, 2147483648
    %v1974 = vmul.f32 %v1973, 1.442695
    %v1975 = vpow.pop %v1974
    %v1976 = vadd.f32 %v1975, 1.0
    %v1977 = vrcp.pop %v1976
    %v1978 = vmul.f32 1.0, %v1977
    %v1979 = vmul.f32 %v1978, %v1890
    %v1980 = vtanh.pop %v1970
    %1982 = vrot.lane.b32.xlu0 %v1980, 32
    %v1983 = vpop.permute.xlu0 %1982
    %v1985 = vmul.f32 %v1978, %v1983
    %1987 = vrot.lane.b32.xlu0 %v1985, 32
    %v1988 = vpop.permute.xlu0 %1987
    %v1990 = vadd.f32 %v1979, %v1988
    %v1991 = vtanh.pop %v1990
    %1993 = vrot.lane.b32.xlu0 %v1991, 32
    %v1994 = vpop.permute.xlu0 %1993
    %v1996 = vmul.f32 %v1978, %v1994
    %v1997 = vld [vmem:[#allocation3 + $0xe] sm:$0x3]
    %1999 = vrot.lane.b32.xlu0 %v1996, 64
    %v2000 = vpop.permute.xlu0 %1999
    %v2001 = vsel %vm254, %v2000, 0
    %2003 = vmatprep.subr.mxu0 0.0
    %2004 = vmatpush1.msra.mxu0 %v240
    %2005 = vmatprep.subr.mxu0 0.0
    %2006 = vmatpush1.msra.mxu0 %v241
    %2007 = vmatprep.subr.mxu0 0.0
    %2008 = vmatpush1.msra.mxu0 %v242
    %2009 = vmatprep.subr.mxu0 0.0
    %2010 = vmatpush1.msra.mxu0 %v243
    %2011 = vmatprep.subr.mxu0 0.0
    %2012 = vmatpush1.msra.mxu0 0.0
    %2013 = vmatprep.subr.mxu0 0.0
    %2014 = vmatpush1.msra.mxu0 0.0
    %2015 = vmatprep.subr.mxu0 0.0
    %2016 = vmatpush1.msra.mxu0 0.0
    %2017 = vmatprep.subr.mxu0 0.0
    %2018 = vmatpush1.msra.mxu0 0.0
    %2019 = vmatprep.subr.mxu0 0.0
    %2020 = vmatpush1.msra.mxu0 0.0
    %2021 = vmatprep.subr.mxu0 0.0
    %2022 = vmatpush1.msra.mxu0 0.0
    %2023 = vmatprep.subr.mxu0 0.0
    %2024 = vmatpush1.msra.mxu0 0.0
    %2025 = vmatprep.subr.mxu0 0.0
    %2026 = vmatpush1.msra.mxu0 0.0
    %2027 = vmatprep.subr.mxu0 0.0
    %2028 = vmatpush1.msra.mxu0 0.0
    %2029 = vmatprep.subr.mxu0 0.0
    %2030 = vmatpush1.msra.mxu0 0.0
    %2031 = vmatprep.subr.mxu0 0.0
    %2032 = vmatpush1.msra.mxu0 0.0
    %2033 = vmatprep.subr.mxu0 0.0
    %2034 = vmatpush1.msra.mxu0 0.0
    %2035 = vmatprep.subr.mxu0 0.0
    %2036 = vmatpush1.msra.mxu0 0.0
    %2037 = vmatprep.subr.mxu0 0.0
    %2038 = vmatpush1.msra.mxu0 0.0
    %2039 = vmatprep.subr.mxu0 0.0
    %2040 = vmatpush1.msra.mxu0 0.0
    %2041 = vmatprep.subr.mxu0 0.0
    %2042 = vmatpush1.msra.mxu0 0.0
    %2043 = vmatprep.subr.mxu0 0.0
    %2044 = vmatpush1.msra.mxu0 0.0
    %2045 = vmatprep.subr.mxu0 0.0
    %2046 = vmatpush1.msra.mxu0 0.0
    %2047 = vmatprep.subr.mxu0 0.0
    %2048 = vmatpush1.msra.mxu0 0.0
    %2049 = vmatprep.subr.mxu0 0.0
    %2050 = vmatpush1.msra.mxu0 0.0
    %2051 = vmatprep.subr.mxu0 0.0
    %2052 = vmatpush1.msra.mxu0 0.0
    %2053 = vmatprep.subr.mxu0 0.0
    %2054 = vmatpush1.msra.mxu0 0.0
    %2055 = vmatprep.subr.mxu0 0.0
    %2056 = vmatpush1.msra.mxu0 0.0
    %2057 = vmatprep.subr.mxu0 0.0
    %2058 = vmatpush1.msra.mxu0 0.0
    %2059 = vmatprep.subr.mxu0 0.0
    %2060 = vmatpush1.msra.mxu0 0.0
    %2061 = vmatprep.subr.mxu0 0.0
    %2062 = vmatpush1.msra.mxu0 0.0
    %2063 = vmatprep.subr.mxu0 0.0
    %2064 = vmatpush1.msra.mxu0 0.0
    %2065 = vmatprep.subr.mxu0 0.0
    %2066 = vmatpush1.msra.mxu0 0.0
    %2067 = vmatprep.mubr.f32.mxu0 0.0
    %2068 = vmatmul.mubr.f32.gmra.mrb[0].mxu0 %v2001
    %v2069 = vpop.f32.mrb[0].mxu0
    %v2070 = vadd.f32 %v1997, %v2069
    %v2071 = vpop.f32.mrb[0].mxu0
    %2072 = vdwg.mxu0
    %v2073 = vxor.u32 %v2070, 2147483648
    %v2074 = vmul.f32 %v2073, 1.442695
    %v2075 = vpow.pop %v2074
    %v2076 = vadd.f32 %v2075, 1.0
    %v2077 = vrcp.pop %v2076
    %v2078 = vmul.f32 1.0, %v2077
    %v2079 = vmul.f32 %v2078, %v1990
    %v2080 = vtanh.pop %v2070
    %2082 = vrot.lane.b32.xlu0 %v2080, 32
    %v2083 = vpop.permute.xlu0 %2082
    %v2085 = vmul.f32 %v2078, %v2083
    %2087 = vrot.lane.b32.xlu0 %v2085, 32
    %v2088 = vpop.permute.xlu0 %2087
    %v2090 = vadd.f32 %v2079, %v2088
    %v2091 = vtanh.pop %v2090
    %2093 = vrot.lane.b32.xlu0 %v2091, 32
    %v2094 = vpop.permute.xlu0 %2093
    %v2096 = vmul.f32 %v2078, %v2094
    %2099 = vrot.lane.b32.xlu0 %v2096, 64
    %v2100 = vpop.permute.xlu0 %2099
    %v2102 = vsel %vm226, %v1400, %v2100
    %v2105 = vsel %vm226, %v1500, %v2000
    %v2108 = vsel %vm226, %v1600, %v1900
    %v2111 = vsel %vm226, %v1700, %v1800
    %v2112 = vsel %vm226, %v1800, %v1700
    %v2113 = vsel %vm226, %v1900, %v1600
    %v2114 = vsel %vm226, %v2000, %v1500
    %v2115 = vsel %vm226, %v2100, %v1400
    %v2117 = vrot.slane %v2105, 7
    %v2120 = vrot.slane %v2108, 6
    %v2123 = vrot.slane %v2111, 5
    %v2126 = vrot.slane %v2112, 4
    %v2129 = vrot.slane %v2113, 3
    %v2132 = vrot.slane %v2114, 2
    %v2135 = vrot.slane %v2115, 1
    %v2138 = vrot.slane %v2102, 1
    %v2140 = vrot.slane %v2108, 7
    %v2142 = vrot.slane %v2111, 6
    %v2144 = vrot.slane %v2112, 5
    %v2146 = vrot.slane %v2113, 4
    %v2148 = vrot.slane %v2114, 3
    %v2150 = vrot.slane %v2115, 2
    %v2152 = vsel %vm192, %v2102, %v2117
    %v2153 = vsel %vm194, %v2152, %v2120
    %v2154 = vsel %vm196, %v2153, %v2123
    %v2155 = vsel %vm198, %v2154, %v2126
    %v2156 = vsel %vm200, %v2155, %v2129
    %v2157 = vsel %vm202, %v2156, %v2132
    %v2158 = vsel %vm204, %v2157, %v2135
    %v2159 = vsel %vm192, %v2138, %v2105
    %v2160 = vsel %vm194, %v2159, %v2140
    %v2161 = vsel %vm196, %v2160, %v2142
    %v2162 = vsel %vm198, %v2161, %v2144
    %v2163 = vsel %vm200, %v2162, %v2146
    %v2164 = vsel %vm202, %v2163, %v2148
    %v2165 = vsel %vm204, %v2164, %v2150
    %v2166 = vlaneseq
    %v2167 = vshrl.u32 %v2166, 7
    %v2168 = vsub.s32 0, %v2167
    %v2169 = vrot.slane %v249, %v2168
    %v2171 = vsel %vm254, %v2158, 0
    %v2174 = vsel %vm254, %v2165, 0
    %2176 = vmatprep.subr.mxu0 0.0
    %2177 = vmatpush1.msra.mxu0 %v245
    %2178 = vmatprep.subr.mxu0 0.0
    %2179 = vmatpush1.msra.mxu0 %v246
    %2180 = vmatprep.subr.mxu0 0.0
    %2181 = vmatpush1.msra.mxu0 %v247
    %2182 = vmatprep.subr.mxu0 0.0
    %2183 = vmatpush1.msra.mxu0 %v248
    %2184 = vmatprep.subr.mxu0 0.0
    %2185 = vmatpush1.msra.mxu0 0.0
    %2186 = vmatprep.subr.mxu0 0.0
    %2187 = vmatpush1.msra.mxu0 0.0
    %2188 = vmatprep.subr.mxu0 0.0
    %2189 = vmatpush1.msra.mxu0 0.0
    %2190 = vmatprep.subr.mxu0 0.0
    %2191 = vmatpush1.msra.mxu0 0.0
    %2192 = vmatprep.subr.mxu0 0.0
    %2193 = vmatpush1.msra.mxu0 0.0
    %2194 = vmatprep.subr.mxu0 0.0
    %2195 = vmatpush1.msra.mxu0 0.0
    %2196 = vmatprep.subr.mxu0 0.0
    %2197 = vmatpush1.msra.mxu0 0.0
    %2198 = vmatprep.subr.mxu0 0.0
    %2199 = vmatpush1.msra.mxu0 0.0
    %2200 = vmatprep.subr.mxu0 0.0
    %2201 = vmatpush1.msra.mxu0 0.0
    %2202 = vmatprep.subr.mxu0 0.0
    %2203 = vmatpush1.msra.mxu0 0.0
    %2204 = vmatprep.subr.mxu0 0.0
    %2205 = vmatpush1.msra.mxu0 0.0
    %2206 = vmatprep.subr.mxu0 0.0
    %2207 = vmatpush1.msra.mxu0 0.0
    %2208 = vmatprep.subr.mxu0 0.0
    %2209 = vmatpush1.msra.mxu0 0.0
    %2210 = vmatprep.subr.mxu0 0.0
    %2211 = vmatpush1.msra.mxu0 0.0
    %2212 = vmatprep.subr.mxu0 0.0
    %2213 = vmatpush1.msra.mxu0 0.0
    %2214 = vmatprep.subr.mxu0 0.0
    %2215 = vmatpush1.msra.mxu0 0.0
    %2216 = vmatprep.subr.mxu0 0.0
    %2217 = vmatpush1.msra.mxu0 0.0
    %2218 = vmatprep.subr.mxu0 0.0
    %2219 = vmatpush1.msra.mxu0 0.0
    %2220 = vmatprep.subr.mxu0 0.0
    %2221 = vmatpush1.msra.mxu0 0.0
    %2222 = vmatprep.subr.mxu0 0.0
    %2223 = vmatpush1.msra.mxu0 0.0
    %2224 = vmatprep.subr.mxu0 0.0
    %2225 = vmatpush1.msra.mxu0 0.0
    %2226 = vmatprep.subr.mxu0 0.0
    %2227 = vmatpush1.msra.mxu0 0.0
    %2228 = vmatprep.subr.mxu0 0.0
    %2229 = vmatpush1.msra.mxu0 0.0
    %2230 = vmatprep.subr.mxu0 0.0
    %2231 = vmatpush1.msra.mxu0 0.0
    %2232 = vmatprep.subr.mxu0 0.0
    %2233 = vmatpush1.msra.mxu0 0.0
    %2234 = vmatprep.subr.mxu0 0.0
    %2235 = vmatpush1.msra.mxu0 0.0
    %2236 = vmatprep.subr.mxu0 0.0
    %2237 = vmatpush1.msra.mxu0 0.0
    %2238 = vmatprep.subr.mxu0 0.0
    %2239 = vmatpush1.msra.mxu0 0.0
    %2240 = vmatprep.mubr.f32.mxu0 0.0
    %2241 = vmatmul.mubr.f32.gmra.mrb[0].mxu0 %v2171
    %v2242 = vpop.f32.mrb[0].mxu0
    %v2243 = vadd.f32 %v2169, %v2242
    %v2244 = vpop.f32.mrb[0].mxu0
    %2245 = vmatprep.mubr.f32.mxu0 0.0
    %2246 = vmatmul.mubr.f32.gmra.mrb[0].mxu0 %v2174
    %v2247 = vpop.f32.mrb[0].mxu0
    %v2248 = vadd.f32 %v2169, %v2247
    %v2249 = vpop.f32.mrb[0].mxu0
    %2250 = vdwg.mxu0
    %2253 = vrot.lane.b32.xlu0 %v2243, 1
    %v2254 = vpop.permute.xlu0 %2253
    %2255 = vrot.lane.b32.xlu0 %v2248, 1
    %v2256 = vpop.permute.xlu0 %2255
    %v2259 = vsub.f32 %v2243, %v2254
    %v2260 = vsub.f32 %v2248, %v2256
    %v2261 = vxor.u32 %v2259, 2147483648
    %v2262 = vxor.u32 %v2260, 2147483648
    %v2263 = vmul.f32 %v2261, 1.442695
    %v2264 = vpow.pop %v2263
    %v2265 = vmul.f32 %v2262, 1.442695
    %v2266 = vpow.pop %v2265
    %v2267 = vadd.f32 %v2264, 1.0
    %v2268 = vadd.f32 %v2266, 1.0
    %v2269 = vrcp.pop %v2267
    %v2270 = vmul.f32 1.0, %v2269
    %v2271 = vrcp.pop %v2268
    %v2272 = vmul.f32 1.0, %v2271
    %v2273 = vsub.f32 1.0, %v2270
    %v2274 = vsub.f32 1.0, %v2272
    %2277 = vrot.lane.b32.xlu0 %v2273, 127
    %v2278 = vpop.permute.xlu0 %2277
    %2279 = vrot.lane.b32.xlu0 %v2274, 127
    %v2280 = vpop.permute.xlu0 %2279
    %vm2283 = vcmask 7168
    %v2284 = vsel %vm2283, %v2278, %v2270
    %v2285 = vsel %vm2283, %v2280, %v2272
    %vm2286 = vcmask 15360
    %2287 = vst.msk [vmem:[%s3] sm:$0xff] %vm2286, %v2284
    %2288 = vst.msk [vmem:[%s3 + $0x8] sm:$0xff] %vm2286, %v2285
    // Predicated region
    $region18: #{tpu_custom_call.1} parent=1 // pred_check
      _
    $region19: #{tpu_custom_call.1} parent=1 // pred_check_branch
      %2290 = sbr.rel (0) target = $region21
    $region20: #{tpu_custom_call.1} parent=1 // pred_region
      _
    $region21: #{tpu_custom_call.1} parent=1 // pred_fallthru
      _
    // Predicated region
    $region22: #{tpu_custom_call.1} parent=1 // pred_check
      _
    $region23: #{tpu_custom_call.1} parent=1 // pred_check_branch
      %2292 = sbr.rel (0) target = $region25
    $region24: #{tpu_custom_call.1} parent=1 // pred_region
      _
    $region25: #{tpu_custom_call.1} parent=1 // pred_fallthru
      _
    %2293 = vsyncpa [#allocation5], 1

</llo_original>
